<compile_context>
chip_gen: v6e
topology: v6e:2x2x1
jax: 0.10.0
libtpu: 0.0.40
codegen_flags: <defaults>
</compile_context>

<pallas_src>
import functools

import jax
import jax.numpy as jnp
from jax.experimental import pallas as pl
from jax.experimental.pallas import tpu as pltpu


def _cdiv(a, b):
    return -(-a // b)


# ----------------------------------------------------------------------------
# Kernel
# ----------------------------------------------------------------------------
def _encoder_kernel(x_ref, w1_ref, b1_ref, w2_ref, b2_ref, o_ref, *,
                    approximate_gelu):
    # x_ref: (tm, 1) f32; w1/b1/b2: (1, D) f32; w2: (D, D) bf16; o: (tm, D).
    # First linear has in_features == 1 -> broadcasted scale + bias (VPU).
    h = x_ref[...] * w1_ref[...] + b1_ref[...]                 # (tm, D) f32
    # GELU in f32. Default tanh form lowers to the EUP slot (otherwise idle),
    # keeping the VALU slot free; approximate=False gives exact-erf parity
    # with torch.nn.GELU at the cost of a large VPU polynomial.
    h = jax.nn.gelu(h, approximate=approximate_gelu)
    # Second linear: bf16 operands, f32 accumulation on the MXU.
    acc = jnp.dot(h.astype(jnp.bfloat16), w2_ref[...],
                  preferred_element_type=jnp.float32)          # (tm, D) f32
    o_ref[...] = (acc + b2_ref[...]).astype(o_ref.dtype)


# ----------------------------------------------------------------------------
# Tiling policy
# ----------------------------------------------------------------------------
def _num_tensorcores():
    # v7x exposes 2 TensorCores per chip; v5e/v6e have 1.
    try:
        kind = jax.devices()[0].device_kind.lower()
    except Exception:
        return 1
    return 2 if "v7" in kind else 1


def _choose_tm(M, *, tm_max=2048, num_tc=None):
    """Row-tile size. Footprint at tm=2048, D=128 is ~6 MiB (incl. the
    lane-sparse (tm,1) x buffer), well inside every generation's scoped VMEM
    default (16 MiB v5e / 32 MiB v6e,v7x)."""
    if num_tc is None:
        num_tc = _num_tensorcores()
    if num_tc <= 1:
        # Single-TC chips: one maximal tile; extra grid steps are pure
        # ~0.35us/step pipeline overhead with no second core to feed.
        tm = min(tm_max, M)
    else:
        # 2-TC chips (v7x): keep an even number of grid steps so both cores
        # get equal work under the "parallel" dimension semantics.
        # TODO(synk): consider pltpu.CORE_PARALLEL / pl.core_map for explicit
        #             cross-TC sharding once validated on v7x.
        steps = max(2, 2 * _cdiv(M, 2 * tm_max))
        tm = _cdiv(M, steps)
    return max(8, ((tm + 7) // 8) * 8)        # sublane multiple


# ----------------------------------------------------------------------------
# Wrapper
# ----------------------------------------------------------------------------
def prepare_params(w1, b1, w2, b2, *, matmul_dtype=jnp.bfloat16):
    """One-time reshape / cast of parameters (hoisted out of the per-call
    wrapper; the w2 bf16 cast also halves the weight DMA)."""
    D = w1.shape[-1]
    return (w1.reshape(1, D).astype(jnp.float32),
            b1.reshape(1, D).astype(jnp.float32),
            w2.reshape(D, D).astype(matmul_dtype),
            b2.reshape(1, D).astype(jnp.float32))


def encoder_pointwise(x, params, *, tm=None, approximate_gelu=True,
                      out_dtype=jnp.bfloat16):
    """x: (...,) f32 -> (..., D). Rows flattened to (M, 1) and row-tiled.

    Defaults (tanh GELU, bf16 output, bf16 MXU operands / f32 accumulation)
    are the performance configuration; pass approximate_gelu=False and
    out_dtype=jnp.float32 for strict torch.nn.GELU / f32 numerics.
    """
    w1, b1, w2, b2 = params
    D = w1.shape[-1]
    lead_shape = x.shape
    M = x.size
    if tm is None:
        tm = _choose_tm(M)
    grid_m = _cdiv(M, tm)

    xf = x.reshape(M, 1).astype(jnp.float32)
    # No wrapper pad / output slice: Pallas masks the ragged last block.

    kernel = functools.partial(_encoder_kernel,
                               approximate_gelu=approximate_gelu)

    out = pl.pallas_call(
        kernel,
        out_shape=jax.ShapeDtypeStruct((M, D), out_dtype),
        grid_spec=pltpu.PrefetchScalarGridSpec(
            num_scalar_prefetch=0,
            grid=(grid_m,),
            in_specs=[
                pl.BlockSpec((tm, 1), lambda i: (i, 0)),   # x rows (streamed)
                pl.BlockSpec((1, D), lambda i: (0, 0)),    # W1 (resident)
                pl.BlockSpec((1, D), lambda i: (0, 0)),    # b1 (resident)
                pl.BlockSpec((D, D), lambda i: (0, 0)),    # W2 (resident bf16)
                pl.BlockSpec((1, D), lambda i: (0, 0)),    # b2 (resident)
            ],
            out_specs=pl.BlockSpec((tm, D), lambda i: (i, 0)),
        ),
        compiler_params=pltpu.CompilerParams(
            dimension_semantics=("parallel",),
        ),
    )(xf, w1, b1, w2, b2)

    return out.reshape(*lead_shape, D)


def make_encoder(w1, b1, w2, b2, **kwargs):
    """Cached jit closure over prepared params (avoids per-call reshape/cast
    and XLA launch overhead on repeated small-M invocations)."""
    params = prepare_params(w1, b1, w2, b2)

    @jax.jit
    def encode(x):
        return encoder_pointwise(x, params, **kwargs)

    return encode


# ----------------------------------------------------------------------------
# Module analogues / references
# ----------------------------------------------------------------------------
def get_latent_grid(N):
    # Analogue of the registered latent-grid buffer (unused in this path).
    xx = jnp.linspace(0.0, 1.0, N)
    yy = jnp.linspace(0.0, 1.0, N)
    gx, gy = jnp.meshgrid(xx, yy, indexing="ij")
    return jnp.stack([gx, gy], axis=-1)[None]     # (1, N, N, 2)


def init_params(key, out_dim):
    # nn.Linear(1, D) and nn.Linear(D, D) shapes, weights stored (in, out).
    k1, k2, k3, k4 = jax.random.split(key, 4)
    w1 = jax.random.uniform(k1, (1, out_dim), jnp.float32, -1.0, 1.0)
    b1 = jax.random.uniform(k2, (1, out_dim), jnp.float32, -1.0, 1.0)
    bound2 = 1.0 / jnp.sqrt(out_dim)
    w2 = jax.random.uniform(k3, (out_dim, out_dim), jnp.float32, -bound2, bound2)
    b2 = jax.random.uniform(k4, (1, out_dim), jnp.float32, -bound2, bound2)
    return w1, b1, w2, b2


def reference_forward_f32(x, w1, b1, w2, b2):
    # Pure-f32, exact-erf reference of the pointwise path (torch numerics).
    h = x[..., None] * w1.reshape(-1) + b1.reshape(-1)
    h = jax.nn.gelu(h, approximate=False)
    return h @ w2 + b2.reshape(-1)


def reference_forward_matched(x, w1, b1, w2, b2):
    # Reference with the kernel's default precision choices: tanh GELU and
    # bf16-operand / f32-accumulate matmul (output kept in f32).
    h = x[..., None] * w1.reshape(-1) + b1.reshape(-1)
    h = jax.nn.gelu(h, approximate=True)
    acc = jnp.dot(h.astype(jnp.bfloat16), w2.astype(jnp.bfloat16),
                  preferred_element_type=jnp.float32)
    return acc + b2.reshape(-1)


if __name__ == "__main__":
    key = jax.random.PRNGKey(0)
    kx, kp, kx2 = jax.random.split(key, 3)

    batch, n_in, in_channels = 2, 64, 4        # M = 512 rows
    out_dim = 128

    x = jax.random.normal(kx, (batch, n_in, in_channels), jnp.float32)
    w1, b1, w2, b2 = init_params(kp, out_dim)
    _latent_grid = get_latent_grid(16)         # buffer analogue (unused here)

    encode = make_encoder(w1, b1, w2, b2)      # reshape/casts hoisted + jit
    z = jax.block_until_ready(encode(x))
    assert z.shape == (batch, n_in, in_channels, out_dim)
    assert z.dtype == jnp.bfloat16
    zf = z.astype(jnp.float32)
    assert bool(jnp.all(jnp.isfinite(zf)))

    z_matched = reference_forward_matched(x, w1, b1, w2, b2)
    z_f32 = reference_forward_f32(x, w1, b1, w2, b2)
    # Matched-precision reference: only MXU accumulation order + bf16 output.
    assert float(jnp.max(jnp.abs(zf - z_matched))) < 5e-2
    # Full-f32 / exact-erf reference: bounded by tanh-GELU + bf16 casts.
    assert float(jnp.max(jnp.abs(zf - z_f32))) < 1e-1

    # Ragged row count: exercises the cdiv grid and Pallas masking of the
    # ragged last block (no wrapper pad / out[:M] slice any more).
    x2 = jax.random.normal(kx2, (1, 21, 3), jnp.float32)   # M = 63
    params = prepare_params(w1, b1, w2, b2)
    z2 = jax.block_until_ready(encoder_pointwise(x2, params))
    z2_f32 = reference_forward_f32(x2, w1, b1, w2, b2)
    assert z2.shape == (1, 21, 3, out_dim)
    assert float(jnp.max(jnp.abs(z2.astype(jnp.float32) - z2_f32))) < 1e-1

    print("KERNEL_OK")
</pallas_src>

<mosaic_0001>
module attributes {stable_mosaic.version = 11 : i64} {
  func.func @_encoder_kernel(%arg0: i32, %arg1: memref<512x1xf32, #tpu.memory_space<vmem>>, %arg2: memref<1x128xf32, #tpu.memory_space<vmem>>, %arg3: memref<1x128xf32, #tpu.memory_space<vmem>>, %arg4: memref<128x128xbf16, #tpu.memory_space<vmem>>, %arg5: memref<1x128xf32, #tpu.memory_space<vmem>>, %arg6: memref<512x128xbf16, #tpu.memory_space<vmem>>) attributes {dimension_semantics = [#tpu.dimension_semantics<parallel>], iteration_bounds = array<i64: 1>, scalar_prefetch = 0 : i64, scratch_operands = 0 : i64, tpu.core_type = #tpu.core_type<tc>, window_params = [{transform_indices = @transform_0, window_bounds = array<i64: 512, 1>}, {pipeline_mode = #tpu.pipeline_mode<synchronous>, transform_indices = @transform_1, window_bounds = array<i64: 1, 128>}, {pipeline_mode = #tpu.pipeline_mode<synchronous>, transform_indices = @transform_2, window_bounds = array<i64: 1, 128>}, {pipeline_mode = #tpu.pipeline_mode<synchronous>, transform_indices = @transform_3, window_bounds = array<i64: 128, 128>}, {pipeline_mode = #tpu.pipeline_mode<synchronous>, transform_indices = @transform_4, window_bounds = array<i64: 1, 128>}, {transform_indices = @transform_5, window_bounds = array<i64: 512, 128>}]} {
    %c0 = arith.constant 0 : index
    %c0_0 = arith.constant 0 : index
    %0 = vector.load %arg1[%c0, %c0_0] : memref<512x1xf32, #tpu.memory_space<vmem>>, vector<512x1xf32>
    %c0_1 = arith.constant 0 : index
    %c0_2 = arith.constant 0 : index
    %1 = vector.load %arg2[%c0_1, %c0_2] : memref<1x128xf32, #tpu.memory_space<vmem>>, vector<1x128xf32>
    %2 = vector.broadcast %0 : vector<512x1xf32> to vector<512x128xf32>
    %3 = vector.broadcast %1 : vector<1x128xf32> to vector<512x128xf32>
    %4 = arith.mulf %2, %3 : vector<512x128xf32>
    %c0_3 = arith.constant 0 : index
    %c0_4 = arith.constant 0 : index
    %5 = vector.load %arg3[%c0_3, %c0_4] : memref<1x128xf32, #tpu.memory_space<vmem>>, vector<1x128xf32>
    %6 = vector.broadcast %5 : vector<1x128xf32> to vector<512x128xf32>
    %7 = arith.addf %4, %6 : vector<512x128xf32>
    %8 = arith.mulf %7, %7 : vector<512x128xf32>
    %9 = arith.mulf %7, %8 : vector<512x128xf32>
    %cst = arith.constant 4.471500e-02 : f32
    %10 = vector.broadcast %cst : f32 to vector<512x128xf32>
    %11 = arith.mulf %10, %9 : vector<512x128xf32>
    %12 = arith.addf %7, %11 : vector<512x128xf32>
    %cst_5 = arith.constant 0.797884583 : f32
    %13 = vector.broadcast %cst_5 : f32 to vector<512x128xf32>
    %14 = arith.mulf %13, %12 : vector<512x128xf32>
    %15 = math.tanh %14 : vector<512x128xf32>
    %cst_6 = arith.constant 1.000000e+00 : f32
    %16 = vector.broadcast %cst_6 : f32 to vector<512x128xf32>
    %17 = arith.addf %16, %15 : vector<512x128xf32>
    %cst_7 = arith.constant 5.000000e-01 : f32
    %18 = vector.broadcast %cst_7 : f32 to vector<512x128xf32>
    %19 = arith.mulf %18, %17 : vector<512x128xf32>
    %20 = arith.mulf %7, %19 : vector<512x128xf32>
    %21 = arith.truncf %20 : vector<512x128xf32> to vector<512x128xbf16>
    %c0_8 = arith.constant 0 : index
    %c0_9 = arith.constant 0 : index
    %22 = vector.load %arg4[%c0_8, %c0_9] : memref<128x128xbf16, #tpu.memory_space<vmem>>, vector<128x128xbf16>
    %cst_10 = arith.constant dense<0.000000e+00> : vector<512x128xf32>
    %23 = tpu.matmul %21, %22, %cst_10 {dimension_numbers = #tpu.dot_dimension_numbers<[1], [0], [0], [1], [0, 0, 1, 1], [], []>} : vector<512x128xbf16>, vector<128x128xbf16>, vector<512x128xf32> -> vector<512x128xf32>
    %c0_11 = arith.constant 0 : index
    %c0_12 = arith.constant 0 : index
    %24 = vector.load %arg5[%c0_11, %c0_12] : memref<1x128xf32, #tpu.memory_space<vmem>>, vector<1x128xf32>
    %25 = vector.broadcast %24 : vector<1x128xf32> to vector<512x128xf32>
    %26 = arith.addf %23, %25 : vector<512x128xf32>
    %27 = arith.truncf %26 : vector<512x128xf32> to vector<512x128xbf16>
    %c0_13 = arith.constant 0 : index
    %c0_14 = arith.constant 0 : index
    %28 = vector.load %arg6[%c0_13, %c0_14] : memref<512x128xbf16, #tpu.memory_space<vmem>>, vector<512x128xbf16>
    tpu.vector_store %arg6[%c0_13, %c0_14], %27 {strides = array<i32>} : memref<512x128xbf16, #tpu.memory_space<vmem>>, vector<512x128xbf16>,
    return
  }
  func.func @transform_0(%arg0: i32) -> (i32, i32) {
    %c0_i32 = arith.constant 0 : i32
    %c0_i32_0 = arith.constant 0 : i32
    return %arg0, %c0_i32 : i32, i32
  }
  func.func @transform_1(%arg0: i32) -> (i32, i32) {
    %c0_i32 = arith.constant 0 : i32
    %c0_i32_0 = arith.constant 0 : i32
    %c0_i32_1 = arith.constant 0 : i32
    return %c0_i32, %c0_i32_0 : i32, i32
  }
  func.func @transform_2(%arg0: i32) -> (i32, i32) {
    %c0_i32 = arith.constant 0 : i32
    %c0_i32_0 = arith.constant 0 : i32
    %c0_i32_1 = arith.constant 0 : i32
    return %c0_i32, %c0_i32_0 : i32, i32
  }
  func.func @transform_3(%arg0: i32) -> (i32, i32) {
    %c0_i32 = arith.constant 0 : i32
    %c0_i32_0 = arith.constant 0 : i32
    %c0_i32_1 = arith.constant 0 : i32
    return %c0_i32, %c0_i32_0 : i32, i32
  }
  func.func @transform_4(%arg0: i32) -> (i32, i32) {
    %c0_i32 = arith.constant 0 : i32
    %c0_i32_0 = arith.constant 0 : i32
    %c0_i32_1 = arith.constant 0 : i32
    return %c0_i32, %c0_i32_0 : i32, i32
  }
  func.func @transform_5(%arg0: i32) -> (i32, i32) {
    %c0_i32 = arith.constant 0 : i32
    %c0_i32_0 = arith.constant 0 : i32
    return %arg0, %c0_i32 : i32, i32
  }
}

</mosaic_0001>

<llo_original>
// kernel: encode.1
$region0: #{encode.1}
  #allocation0 [shape = 'u32[]', space=smem, size = 0x4, offset = 0x4, fixed_abs, tag = 'smem constant byte address 0x4 - core index']
  #allocation1 [shape = 'u32[144,128]{1,0:T(1,128)}', space=vmem, size = 0x12000, scoped, tag = 'internal scratch']
  %s0 = inlined_call_operand.vmem [shape: f32[512,1], index: 0, kind: input, shape index: {}]
  %s1 = inlined_call_operand.vmem [shape: f32[1,128], index: 1, kind: input, shape index: {}]
  %s2 = inlined_call_operand.vmem [shape: f32[1,128], index: 2, kind: input, shape index: {}]
  %s3 = inlined_call_operand.vmem [shape: bf16[128,128], index: 3, kind: input, shape index: {}]
  %s4 = inlined_call_operand.vmem [shape: f32[1,128], index: 4, kind: input, shape index: {}]
  %s5 = inlined_call_operand.hbm [shape: bf16[512,128], index: 5, kind: output, shape index: {}]
  %s6 = sld [smem:[#allocation0]]
  $region30: #{encode.1} parent=0
    _
  %s8 = ssub.s32 1, %s6
  %s9 = scalar_select 0, %s8, %s6
  $region1: #{encode.1} parent=0
    #allocation2 [shape = 'u8[131072]{0}', space=vmem, size = 0x20000, scoped, tag = 'output window, operand 0, single buffered']
    #allocation3 [shape = 's32[1]{0}', space=sflag, size = 0x4, scoped, tag = 'scoped memory for encode.1']
    %10 = vsyncpa [#allocation3], 0
    // Predicated region
    $region2: #{encode.1} parent=1 // pred_check
      _
    $region3: #{encode.1} parent=1 // pred_check_branch
      %12 = sbr.rel (0) target = $region5
    $region4: #{encode.1} parent=1 // pred_region
      _
    $region5: #{encode.1} parent=1 // pred_fallthru
      _
    // Predicated region
    $region6: #{encode.1} parent=1 // pred_check
      _
    $region7: #{encode.1} parent=1 // pred_check_branch
      %14 = sbr.rel (0) target = $region9
    $region8: #{encode.1} parent=1 // pred_region
      _
    $region9: #{encode.1} parent=1 // pred_fallthru
      _
    // Predicated region
    $region10: #{encode.1} parent=1 // pred_check
      _
    $region11: #{encode.1} parent=1 // pred_check_branch
      %16 = sbr.rel (0) target = $region13
    $region12: #{encode.1} parent=1 // pred_region
      _
    $region13: #{encode.1} parent=1 // pred_fallthru
      _
    // Predicated region
    $region14: #{encode.1} parent=1 // pred_check
      _
    $region15: #{encode.1} parent=1 // pred_check_branch
      %18 = sbr.rel (0) target = $region17
    $region16: #{encode.1} parent=1 // pred_region
      _
    $region17: #{encode.1} parent=1 // pred_fallthru
      _
    // Predicated region
    $region18: #{encode.1} parent=1 // pred_check
      _
    $region19: #{encode.1} parent=1 // pred_check_branch
      %20 = sbr.rel (0) target = $region21
    $region20: #{encode.1} parent=1 // pred_region
      _
    $region21: #{encode.1} parent=1 // pred_fallthru
      _
    %v22 = vld [vmem:[%s0] sm:$0xff]
    %v23 = vld [vmem:[%s0 + $0x8] sm:$0xff]
    %v24 = vld [vmem:[%s0 + $0x10] sm:$0xff]
    %v25 = vld [vmem:[%s0 + $0x18] sm:$0xff]
    %v26 = vld [vmem:[%s0 + $0x20] sm:$0xff]
    %v27 = vld [vmem:[%s0 + $0x28] sm:$0xff]
    %v28 = vld [vmem:[%s0 + $0x30] sm:$0xff]
    %v29 = vld [vmem:[%s0 + $0x38] sm:$0xff]
    %v30 = vld [vmem:[%s0 + $0x40] sm:$0xff]
    %v31 = vld [vmem:[%s0 + $0x48] sm:$0xff]
    %v32 = vld [vmem:[%s0 + $0x50] sm:$0xff]
    %v33 = vld [vmem:[%s0 + $0x58] sm:$0xff]
    %v34 = vld [vmem:[%s0 + $0x60] sm:$0xff]
    %v35 = vld [vmem:[%s0 + $0x68] sm:$0xff]
    %v36 = vld [vmem:[%s0 + $0x70] sm:$0xff]
    %v37 = vld [vmem:[%s0 + $0x78] sm:$0xff]
    %v38 = vld [vmem:[%s0 + $0x80] sm:$0xff]
    %v39 = vld [vmem:[%s0 + $0x88] sm:$0xff]
    %v40 = vld [vmem:[%s0 + $0x90] sm:$0xff]
    %v41 = vld [vmem:[%s0 + $0x98] sm:$0xff]
    %v42 = vld [vmem:[%s0 + $0xa0] sm:$0xff]
    %v43 = vld [vmem:[%s0 + $0xa8] sm:$0xff]
    %v44 = vld [vmem:[%s0 + $0xb0] sm:$0xff]
    %v45 = vld [vmem:[%s0 + $0xb8] sm:$0xff]
    %v46 = vld [vmem:[%s0 + $0xc0] sm:$0xff]
    %v47 = vld [vmem:[%s0 + $0xc8] sm:$0xff]
    %v48 = vld [vmem:[%s0 + $0xd0] sm:$0xff]
    %v49 = vld [vmem:[%s0 + $0xd8] sm:$0xff]
    %v50 = vld [vmem:[%s0 + $0xe0] sm:$0xff]
    %v51 = vld [vmem:[%s0 + $0xe8] sm:$0xff]
    %v52 = vld [vmem:[%s0 + $0xf0] sm:$0xff]
    %v53 = vld [vmem:[%s0 + $0xf8] sm:$0xff]
    %v54 = vld [vmem:[%s0 + $0x100] sm:$0xff]
    %v55 = vld [vmem:[%s0 + $0x108] sm:$0xff]
    %v56 = vld [vmem:[%s0 + $0x110] sm:$0xff]
    %v57 = vld [vmem:[%s0 + $0x118] sm:$0xff]
    %v58 = vld [vmem:[%s0 + $0x120] sm:$0xff]
    %v59 = vld [vmem:[%s0 + $0x128] sm:$0xff]
    %v60 = vld [vmem:[%s0 + $0x130] sm:$0xff]
    %v61 = vld [vmem:[%s0 + $0x138] sm:$0xff]
    %v62 = vld [vmem:[%s0 + $0x140] sm:$0xff]
    %v63 = vld [vmem:[%s0 + $0x148] sm:$0xff]
    %v64 = vld [vmem:[%s0 + $0x150] sm:$0xff]
    %v65 = vld [vmem:[%s0 + $0x158] sm:$0xff]
    %v66 = vld [vmem:[%s0 + $0x160] sm:$0xff]
    %v67 = vld [vmem:[%s0 + $0x168] sm:$0xff]
    %v68 = vld [vmem:[%s0 + $0x170] sm:$0xff]
    %v69 = vld [vmem:[%s0 + $0x178] sm:$0xff]
    %v70 = vld [vmem:[%s0 + $0x180] sm:$0xff]
    %v71 = vld [vmem:[%s0 + $0x188] sm:$0xff]
    %v72 = vld [vmem:[%s0 + $0x190] sm:$0xff]
    %v73 = vld [vmem:[%s0 + $0x198] sm:$0xff]
    %v74 = vld [vmem:[%s0 + $0x1a0] sm:$0xff]
    %v75 = vld [vmem:[%s0 + $0x1a8] sm:$0xff]
    %v76 = vld [vmem:[%s0 + $0x1b0] sm:$0xff]
    %v77 = vld [vmem:[%s0 + $0x1b8] sm:$0xff]
    %v78 = vld [vmem:[%s0 + $0x1c0] sm:$0xff]
    %v79 = vld [vmem:[%s0 + $0x1c8] sm:$0xff]
    %v80 = vld [vmem:[%s0 + $0x1d0] sm:$0xff]
    %v81 = vld [vmem:[%s0 + $0x1d8] sm:$0xff]
    %v82 = vld [vmem:[%s0 + $0x1e0] sm:$0xff]
    %v83 = vld [vmem:[%s0 + $0x1e8] sm:$0xff]
    %v84 = vld [vmem:[%s0 + $0x1f0] sm:$0xff]
    %v85 = vld [vmem:[%s0 + $0x1f8] sm:$0xff]
    %v86 = vld [vmem:[%s1] sm:$0x1]
    %88 = vset.pattern.permute.xlu0 0
    %89 = vperm.xlu0 %88, %v22
    %v90 = vpop.permute.xlu0 %89
    %93 = vset.pattern.permute.xlu0 0
    %94 = vperm.xlu0 %93, %v23
    %v95 = vpop.permute.xlu0 %94
    %98 = vset.pattern.permute.xlu0 0
    %99 = vperm.xlu0 %98, %v24
    %v100 = vpop.permute.xlu0 %99
    %103 = vset.pattern.permute.xlu0 0
    %104 = vperm.xlu0 %103, %v25
    %v105 = vpop.permute.xlu0 %104
    %108 = vset.pattern.permute.xlu0 0
    %109 = vperm.xlu0 %108, %v26
    %v110 = vpop.permute.xlu0 %109
    %113 = vset.pattern.permute.xlu0 0
    %114 = vperm.xlu0 %113, %v27
    %v115 = vpop.permute.xlu0 %114
    %118 = vset.pattern.permute.xlu0 0
    %119 = vperm.xlu0 %118, %v28
    %v120 = vpop.permute.xlu0 %119
    %123 = vset.pattern.permute.xlu0 0
    %124 = vperm.xlu0 %123, %v29
    %v125 = vpop.permute.xlu0 %124
    %128 = vset.pattern.permute.xlu0 0
    %129 = vperm.xlu0 %128, %v30
    %v130 = vpop.permute.xlu0 %129
    %133 = vset.pattern.permute.xlu0 0
    %134 = vperm.xlu0 %133, %v31
    %v135 = vpop.permute.xlu0 %134
    %138 = vset.pattern.permute.xlu0 0
    %139 = vperm.xlu0 %138, %v32
    %v140 = vpop.permute.xlu0 %139
    %143 = vset.pattern.permute.xlu0 0
    %144 = vperm.xlu0 %143, %v33
    %v145 = vpop.permute.xlu0 %144
    %148 = vset.pattern.permute.xlu0 0
    %149 = vperm.xlu0 %148, %v34
    %v150 = vpop.permute.xlu0 %149
    %153 = vset.pattern.permute.xlu0 0
    %154 = vperm.xlu0 %153, %v35
    %v155 = vpop.permute.xlu0 %154
    %158 = vset.pattern.permute.xlu0 0
    %159 = vperm.xlu0 %158, %v36
    %v160 = vpop.permute.xlu0 %159
    %163 = vset.pattern.permute.xlu0 0
    %164 = vperm.xlu0 %163, %v37
    %v165 = vpop.permute.xlu0 %164
    %168 = vset.pattern.permute.xlu0 0
    %169 = vperm.xlu0 %168, %v38
    %v170 = vpop.permute.xlu0 %169
    %173 = vset.pattern.permute.xlu0 0
    %174 = vperm.xlu0 %173, %v39
    %v175 = vpop.permute.xlu0 %174
    %178 = vset.pattern.permute.xlu0 0
    %179 = vperm.xlu0 %178, %v40
    %v180 = vpop.permute.xlu0 %179
    %183 = vset.pattern.permute.xlu0 0
    %184 = vperm.xlu0 %183, %v41
    %v185 = vpop.permute.xlu0 %184
    %188 = vset.pattern.permute.xlu0 0
    %189 = vperm.xlu0 %188, %v42
    %v190 = vpop.permute.xlu0 %189
    %193 = vset.pattern.permute.xlu0 0
    %194 = vperm.xlu0 %193, %v43
    %v195 = vpop.permute.xlu0 %194
    %198 = vset.pattern.permute.xlu0 0
    %199 = vperm.xlu0 %198, %v44
    %v200 = vpop.permute.xlu0 %199
    %203 = vset.pattern.permute.xlu0 0
    %204 = vperm.xlu0 %203, %v45
    %v205 = vpop.permute.xlu0 %204
    %208 = vset.pattern.permute.xlu0 0
    %209 = vperm.xlu0 %208, %v46
    %v210 = vpop.permute.xlu0 %209
    %213 = vset.pattern.permute.xlu0 0
    %214 = vperm.xlu0 %213, %v47
    %v215 = vpop.permute.xlu0 %214
    %218 = vset.pattern.permute.xlu0 0
    %219 = vperm.xlu0 %218, %v48
    %v220 = vpop.permute.xlu0 %219
    %223 = vset.pattern.permute.xlu0 0
    %224 = vperm.xlu0 %223, %v49
    %v225 = vpop.permute.xlu0 %224
    %228 = vset.pattern.permute.xlu0 0
    %229 = vperm.xlu0 %228, %v50
    %v230 = vpop.permute.xlu0 %229
    %233 = vset.pattern.permute.xlu0 0
    %234 = vperm.xlu0 %233, %v51
    %v235 = vpop.permute.xlu0 %234
    %238 = vset.pattern.permute.xlu0 0
    %239 = vperm.xlu0 %238, %v52
    %v240 = vpop.permute.xlu0 %239
    %243 = vset.pattern.permute.xlu0 0
    %244 = vperm.xlu0 %243, %v53
    %v245 = vpop.permute.xlu0 %244
    %248 = vset.pattern.permute.xlu0 0
    %249 = vperm.xlu0 %248, %v54
    %v250 = vpop.permute.xlu0 %249
    %253 = vset.pattern.permute.xlu0 0
    %254 = vperm.xlu0 %253, %v55
    %v255 = vpop.permute.xlu0 %254
    %258 = vset.pattern.permute.xlu0 0
    %259 = vperm.xlu0 %258, %v56
    %v260 = vpop.permute.xlu0 %259
    %263 = vset.pattern.permute.xlu0 0
    %264 = vperm.xlu0 %263, %v57
    %v265 = vpop.permute.xlu0 %264
    %268 = vset.pattern.permute.xlu0 0
    %269 = vperm.xlu0 %268, %v58
    %v270 = vpop.permute.xlu0 %269
    %273 = vset.pattern.permute.xlu0 0
    %274 = vperm.xlu0 %273, %v59
    %v275 = vpop.permute.xlu0 %274
    %278 = vset.pattern.permute.xlu0 0
    %279 = vperm.xlu0 %278, %v60
    %v280 = vpop.permute.xlu0 %279
    %283 = vset.pattern.permute.xlu0 0
    %284 = vperm.xlu0 %283, %v61
    %v285 = vpop.permute.xlu0 %284
    %288 = vset.pattern.permute.xlu0 0
    %289 = vperm.xlu0 %288, %v62
    %v290 = vpop.permute.xlu0 %289
    %293 = vset.pattern.permute.xlu0 0
    %294 = vperm.xlu0 %293, %v63
    %v295 = vpop.permute.xlu0 %294
    %298 = vset.pattern.permute.xlu0 0
    %299 = vperm.xlu0 %298, %v64
    %v300 = vpop.permute.xlu0 %299
    %303 = vset.pattern.permute.xlu0 0
    %304 = vperm.xlu0 %303, %v65
    %v305 = vpop.permute.xlu0 %304
    %308 = vset.pattern.permute.xlu0 0
    %309 = vperm.xlu0 %308, %v66
    %v310 = vpop.permute.xlu0 %309
    %313 = vset.pattern.permute.xlu0 0
    %314 = vperm.xlu0 %313, %v67
    %v315 = vpop.permute.xlu0 %314
    %318 = vset.pattern.permute.xlu0 0
    %319 = vperm.xlu0 %318, %v68
    %v320 = vpop.permute.xlu0 %319
    %323 = vset.pattern.permute.xlu0 0
    %324 = vperm.xlu0 %323, %v69
    %v325 = vpop.permute.xlu0 %324
    %328 = vset.pattern.permute.xlu0 0
    %329 = vperm.xlu0 %328, %v70
    %v330 = vpop.permute.xlu0 %329
    %333 = vset.pattern.permute.xlu0 0
    %334 = vperm.xlu0 %333, %v71
    %v335 = vpop.permute.xlu0 %334
    %338 = vset.pattern.permute.xlu0 0
    %339 = vperm.xlu0 %338, %v72
    %v340 = vpop.permute.xlu0 %339
    %343 = vset.pattern.permute.xlu0 0
    %344 = vperm.xlu0 %343, %v73
    %v345 = vpop.permute.xlu0 %344
    %348 = vset.pattern.permute.xlu0 0
    %349 = vperm.xlu0 %348, %v74
    %v350 = vpop.permute.xlu0 %349
    %353 = vset.pattern.permute.xlu0 0
    %354 = vperm.xlu0 %353, %v75
    %v355 = vpop.permute.xlu0 %354
    %358 = vset.pattern.permute.xlu0 0
    %359 = vperm.xlu0 %358, %v76
    %v360 = vpop.permute.xlu0 %359
    %363 = vset.pattern.permute.xlu0 0
    %364 = vperm.xlu0 %363, %v77
    %v365 = vpop.permute.xlu0 %364
    %368 = vset.pattern.permute.xlu0 0
    %369 = vperm.xlu0 %368, %v78
    %v370 = vpop.permute.xlu0 %369
    %373 = vset.pattern.permute.xlu0 0
    %374 = vperm.xlu0 %373, %v79
    %v375 = vpop.permute.xlu0 %374
    %378 = vset.pattern.permute.xlu0 0
    %379 = vperm.xlu0 %378, %v80
    %v380 = vpop.permute.xlu0 %379
    %383 = vset.pattern.permute.xlu0 0
    %384 = vperm.xlu0 %383, %v81
    %v385 = vpop.permute.xlu0 %384
    %388 = vset.pattern.permute.xlu0 0
    %389 = vperm.xlu0 %388, %v82
    %v390 = vpop.permute.xlu0 %389
    %393 = vset.pattern.permute.xlu0 0
    %394 = vperm.xlu0 %393, %v83
    %v395 = vpop.permute.xlu0 %394
    %398 = vset.pattern.permute.xlu0 0
    %399 = vperm.xlu0 %398, %v84
    %v400 = vpop.permute.xlu0 %399
    %403 = vset.pattern.permute.xlu0 0
    %404 = vperm.xlu0 %403, %v85
    %v405 = vpop.permute.xlu0 %404
    %v408 = vlaneseq
    %v409 = vshrl.u32 %v408, 7
    %v410 = vsub.s32 0, %v409
    %v411 = vrot.slane %v86, %v410
    %v413 = vmul.f32 %v90, %v411
    %v414 = vmul.f32 %v95, %v411
    %v415 = vmul.f32 %v100, %v411
    %v416 = vmul.f32 %v105, %v411
    %v417 = vmul.f32 %v110, %v411
    %v418 = vmul.f32 %v115, %v411
    %v419 = vmul.f32 %v120, %v411
    %v420 = vmul.f32 %v125, %v411
    %v421 = vmul.f32 %v130, %v411
    %v422 = vmul.f32 %v135, %v411
    %v423 = vmul.f32 %v140, %v411
    %v424 = vmul.f32 %v145, %v411
    %v425 = vmul.f32 %v150, %v411
    %v426 = vmul.f32 %v155, %v411
    %v427 = vmul.f32 %v160, %v411
    %v428 = vmul.f32 %v165, %v411
    %v429 = vmul.f32 %v170, %v411
    %v430 = vmul.f32 %v175, %v411
    %v431 = vmul.f32 %v180, %v411
    %v432 = vmul.f32 %v185, %v411
    %v433 = vmul.f32 %v190, %v411
    %v434 = vmul.f32 %v195, %v411
    %v435 = vmul.f32 %v200, %v411
    %v436 = vmul.f32 %v205, %v411
    %v437 = vmul.f32 %v210, %v411
    %v438 = vmul.f32 %v215, %v411
    %v439 = vmul.f32 %v220, %v411
    %v440 = vmul.f32 %v225, %v411
    %v441 = vmul.f32 %v230, %v411
    %v442 = vmul.f32 %v235, %v411
    %v443 = vmul.f32 %v240, %v411
    %v444 = vmul.f32 %v245, %v411
    %v445 = vmul.f32 %v250, %v411
    %v446 = vmul.f32 %v255, %v411
    %v447 = vmul.f32 %v260, %v411
    %v448 = vmul.f32 %v265, %v411
    %v449 = vmul.f32 %v270, %v411
    %v450 = vmul.f32 %v275, %v411
    %v451 = vmul.f32 %v280, %v411
    %v452 = vmul.f32 %v285, %v411
    %v453 = vmul.f32 %v290, %v411
    %v454 = vmul.f32 %v295, %v411
    %v455 = vmul.f32 %v300, %v411
    %v456 = vmul.f32 %v305, %v411
    %v457 = vmul.f32 %v310, %v411
    %v458 = vmul.f32 %v315, %v411
    %v459 = vmul.f32 %v320, %v411
    %v460 = vmul.f32 %v325, %v411
    %v461 = vmul.f32 %v330, %v411
    %v462 = vmul.f32 %v335, %v411
    %v463 = vmul.f32 %v340, %v411
    %v464 = vmul.f32 %v345, %v411
    %v465 = vmul.f32 %v350, %v411
    %v466 = vmul.f32 %v355, %v411
    %v467 = vmul.f32 %v360, %v411
    %v468 = vmul.f32 %v365, %v411
    %v469 = vmul.f32 %v370, %v411
    %v470 = vmul.f32 %v375, %v411
    %v471 = vmul.f32 %v380, %v411
    %v472 = vmul.f32 %v385, %v411
    %v473 = vmul.f32 %v390, %v411
    %v474 = vmul.f32 %v395, %v411
    %v475 = vmul.f32 %v400, %v411
    %v476 = vmul.f32 %v405, %v411
    %v477 = vld [vmem:[%s2] sm:$0x1]
    %v479 = vlaneseq
    %v480 = vshrl.u32 %v479, 7
    %v481 = vsub.s32 0, %v480
    %v482 = vrot.slane %v477, %v481
    %v484 = vadd.f32 %v413, %v482
    %v485 = vadd.f32 %v414, %v482
    %v486 = vadd.f32 %v415, %v482
    %v487 = vadd.f32 %v416, %v482
    %v488 = vadd.f32 %v417, %v482
    %v489 = vadd.f32 %v418, %v482
    %v490 = vadd.f32 %v419, %v482
    %v491 = vadd.f32 %v420, %v482
    %v492 = vadd.f32 %v421, %v482
    %v493 = vadd.f32 %v422, %v482
    %v494 = vadd.f32 %v423, %v482
    %v495 = vadd.f32 %v424, %v482
    %v496 = vadd.f32 %v425, %v482
    %v497 = vadd.f32 %v426, %v482
    %v498 = vadd.f32 %v427, %v482
    %v499 = vadd.f32 %v428, %v482
    %v500 = vadd.f32 %v429, %v482
    %v501 = vadd.f32 %v430, %v482
    %v502 = vadd.f32 %v431, %v482
    %v503 = vadd.f32 %v432, %v482
    %v504 = vadd.f32 %v433, %v482
    %v505 = vadd.f32 %v434, %v482
    %v506 = vadd.f32 %v435, %v482
    %v507 = vadd.f32 %v436, %v482
    %v508 = vadd.f32 %v437, %v482
    %v509 = vadd.f32 %v438, %v482
    %v510 = vadd.f32 %v439, %v482
    %v511 = vadd.f32 %v440, %v482
    %v512 = vadd.f32 %v441, %v482
    %v513 = vadd.f32 %v442, %v482
    %v514 = vadd.f32 %v443, %v482
    %v515 = vadd.f32 %v444, %v482
    %v516 = vadd.f32 %v445, %v482
    %v517 = vadd.f32 %v446, %v482
    %v518 = vadd.f32 %v447, %v482
    %v519 = vadd.f32 %v448, %v482
    %v520 = vadd.f32 %v449, %v482
    %v521 = vadd.f32 %v450, %v482
    %v522 = vadd.f32 %v451, %v482
    %v523 = vadd.f32 %v452, %v482
    %v524 = vadd.f32 %v453, %v482
    %v525 = vadd.f32 %v454, %v482
    %v526 = vadd.f32 %v455, %v482
    %v527 = vadd.f32 %v456, %v482
    %v528 = vadd.f32 %v457, %v482
    %v529 = vadd.f32 %v458, %v482
    %v530 = vadd.f32 %v459, %v482
    %v531 = vadd.f32 %v460, %v482
    %v532 = vadd.f32 %v461, %v482
    %v533 = vadd.f32 %v462, %v482
    %v534 = vadd.f32 %v463, %v482
    %v535 = vadd.f32 %v464, %v482
    %v536 = vadd.f32 %v465, %v482
    %v537 = vadd.f32 %v466, %v482
    %v538 = vadd.f32 %v467, %v482
    %v539 = vadd.f32 %v468, %v482
    %v540 = vadd.f32 %v469, %v482
    %v541 = vadd.f32 %v470, %v482
    %v542 = vadd.f32 %v471, %v482
    %v543 = vadd.f32 %v472, %v482
    %v544 = vadd.f32 %v473, %v482
    %v545 = vadd.f32 %v474, %v482
    %v546 = vadd.f32 %v475, %v482
    %v547 = vadd.f32 %v476, %v482
    %v548 = vmul.f32 %v484, %v484
    %v549 = vmul.f32 %v485, %v485
    %v550 = vmul.f32 %v486, %v486
    %v551 = vmul.f32 %v487, %v487
    %v552 = vmul.f32 %v488, %v488
    %v553 = vmul.f32 %v489, %v489
    %v554 = vmul.f32 %v490, %v490
    %v555 = vmul.f32 %v491, %v491
    %v556 = vmul.f32 %v492, %v492
    %v557 = vmul.f32 %v493, %v493
    %v558 = vmul.f32 %v494, %v494
    %v559 = vmul.f32 %v495, %v495
    %v560 = vmul.f32 %v496, %v496
    %v561 = vmul.f32 %v497, %v497
    %v562 = vmul.f32 %v498, %v498
    %v563 = vmul.f32 %v499, %v499
    %v564 = vmul.f32 %v500, %v500
    %v565 = vmul.f32 %v501, %v501
    %v566 = vmul.f32 %v502, %v502
    %v567 = vmul.f32 %v503, %v503
    %v568 = vmul.f32 %v504, %v504
    %v569 = vmul.f32 %v505, %v505
    %v570 = vmul.f32 %v506, %v506
    %v571 = vmul.f32 %v507, %v507
    %v572 = vmul.f32 %v508, %v508
    %v573 = vmul.f32 %v509, %v509
    %v574 = vmul.f32 %v510, %v510
    %v575 = vmul.f32 %v511, %v511
    %v576 = vmul.f32 %v512, %v512
    %v577 = vmul.f32 %v513, %v513
    %v578 = vmul.f32 %v514, %v514
    %v579 = vmul.f32 %v515, %v515
    %v580 = vmul.f32 %v516, %v516
    %v581 = vmul.f32 %v517, %v517
    %v582 = vmul.f32 %v518, %v518
    %v583 = vmul.f32 %v519, %v519
    %v584 = vmul.f32 %v520, %v520
    %v585 = vmul.f32 %v521, %v521
    %v586 = vmul.f32 %v522, %v522
    %v587 = vmul.f32 %v523, %v523
    %v588 = vmul.f32 %v524, %v524
    %v589 = vmul.f32 %v525, %v525
    %v590 = vmul.f32 %v526, %v526
    %v591 = vmul.f32 %v527, %v527
    %v592 = vmul.f32 %v528, %v528
    %v593 = vmul.f32 %v529, %v529
    %v594 = vmul.f32 %v530, %v530
    %v595 = vmul.f32 %v531, %v531
    %v596 = vmul.f32 %v532, %v532
    %v597 = vmul.f32 %v533, %v533
    %v598 = vmul.f32 %v534, %v534
    %v599 = vmul.f32 %v535, %v535
    %v600 = vmul.f32 %v536, %v536
    %v601 = vmul.f32 %v537, %v537
    %v602 = vmul.f32 %v538, %v538
    %v603 = vmul.f32 %v539, %v539
    %v604 = vmul.f32 %v540, %v540
    %v605 = vmul.f32 %v541, %v541
    %v606 = vmul.f32 %v542, %v542
    %v607 = vmul.f32 %v543, %v543
    %v608 = vmul.f32 %v544, %v544
    %v609 = vmul.f32 %v545, %v545
    %v610 = vmul.f32 %v546, %v546
    %v611 = vmul.f32 %v547, %v547
    %v612 = vmul.f32 %v484, %v548
    %v613 = vmul.f32 %v485, %v549
    %v614 = vmul.f32 %v486, %v550
    %v615 = vmul.f32 %v487, %v551
    %v616 = vmul.f32 %v488, %v552
    %v617 = vmul.f32 %v489, %v553
    %v618 = vmul.f32 %v490, %v554
    %v619 = vmul.f32 %v491, %v555
    %v620 = vmul.f32 %v492, %v556
    %v621 = vmul.f32 %v493, %v557
    %v622 = vmul.f32 %v494, %v558
    %v623 = vmul.f32 %v495, %v559
    %v624 = vmul.f32 %v496, %v560
    %v625 = vmul.f32 %v497, %v561
    %v626 = vmul.f32 %v498, %v562
    %v627 = vmul.f32 %v499, %v563
    %v628 = vmul.f32 %v500, %v564
    %v629 = vmul.f32 %v501, %v565
    %v630 = vmul.f32 %v502, %v566
    %v631 = vmul.f32 %v503, %v567
    %v632 = vmul.f32 %v504, %v568
    %v633 = vmul.f32 %v505, %v569
    %v634 = vmul.f32 %v506, %v570
    %v635 = vmul.f32 %v507, %v571
    %v636 = vmul.f32 %v508, %v572
    %v637 = vmul.f32 %v509, %v573
    %v638 = vmul.f32 %v510, %v574
    %v639 = vmul.f32 %v511, %v575
    %v640 = vmul.f32 %v512, %v576
    %v641 = vmul.f32 %v513, %v577
    %v642 = vmul.f32 %v514, %v578
    %v643 = vmul.f32 %v515, %v579
    %v644 = vmul.f32 %v516, %v580
    %v645 = vmul.f32 %v517, %v581
    %v646 = vmul.f32 %v518, %v582
    %v647 = vmul.f32 %v519, %v583
    %v648 = vmul.f32 %v520, %v584
    %v649 = vmul.f32 %v521, %v585
    %v650 = vmul.f32 %v522, %v586
    %v651 = vmul.f32 %v523, %v587
    %v652 = vmul.f32 %v524, %v588
    %v653 = vmul.f32 %v525, %v589
    %v654 = vmul.f32 %v526, %v590
    %v655 = vmul.f32 %v527, %v591
    %v656 = vmul.f32 %v528, %v592
    %v657 = vmul.f32 %v529, %v593
    %v658 = vmul.f32 %v530, %v594
    %v659 = vmul.f32 %v531, %v595
    %v660 = vmul.f32 %v532, %v596
    %v661 = vmul.f32 %v533, %v597
    %v662 = vmul.f32 %v534, %v598
    %v663 = vmul.f32 %v535, %v599
    %v664 = vmul.f32 %v536, %v600
    %v665 = vmul.f32 %v537, %v601
    %v666 = vmul.f32 %v538, %v602
    %v667 = vmul.f32 %v539, %v603
    %v668 = vmul.f32 %v540, %v604
    %v669 = vmul.f32 %v541, %v605
    %v670 = vmul.f32 %v542, %v606
    %v671 = vmul.f32 %v543, %v607
    %v672 = vmul.f32 %v544, %v608
    %v673 = vmul.f32 %v545, %v609
    %v674 = vmul.f32 %v546, %v610
    %v675 = vmul.f32 %v547, %v611
    %v676 = vmul.f32 %v612, 0.044715
    %v677 = vmul.f32 %v613, 0.044715
    %v678 = vmul.f32 %v614, 0.044715
    %v679 = vmul.f32 %v615, 0.044715
    %v680 = vmul.f32 %v616, 0.044715
    %v681 = vmul.f32 %v617, 0.044715
    %v682 = vmul.f32 %v618, 0.044715
    %v683 = vmul.f32 %v619, 0.044715
    %v684 = vmul.f32 %v620, 0.044715
    %v685 = vmul.f32 %v621, 0.044715
    %v686 = vmul.f32 %v622, 0.044715
    %v687 = vmul.f32 %v623, 0.044715
    %v688 = vmul.f32 %v624, 0.044715
    %v689 = vmul.f32 %v625, 0.044715
    %v690 = vmul.f32 %v626, 0.044715
    %v691 = vmul.f32 %v627, 0.044715
    %v692 = vmul.f32 %v628, 0.044715
    %v693 = vmul.f32 %v629, 0.044715
    %v694 = vmul.f32 %v630, 0.044715
    %v695 = vmul.f32 %v631, 0.044715
    %v696 = vmul.f32 %v632, 0.044715
    %v697 = vmul.f32 %v633, 0.044715
    %v698 = vmul.f32 %v634, 0.044715
    %v699 = vmul.f32 %v635, 0.044715
    %v700 = vmul.f32 %v636, 0.044715
    %v701 = vmul.f32 %v637, 0.044715
    %v702 = vmul.f32 %v638, 0.044715
    %v703 = vmul.f32 %v639, 0.044715
    %v704 = vmul.f32 %v640, 0.044715
    %v705 = vmul.f32 %v641, 0.044715
    %v706 = vmul.f32 %v642, 0.044715
    %v707 = vmul.f32 %v643, 0.044715
    %v708 = vmul.f32 %v644, 0.044715
    %v709 = vmul.f32 %v645, 0.044715
    %v710 = vmul.f32 %v646, 0.044715
    %v711 = vmul.f32 %v647, 0.044715
    %v712 = vmul.f32 %v648, 0.044715
    %v713 = vmul.f32 %v649, 0.044715
    %v714 = vmul.f32 %v650, 0.044715
    %v715 = vmul.f32 %v651, 0.044715
    %v716 = vmul.f32 %v652, 0.044715
    %v717 = vmul.f32 %v653, 0.044715
    %v718 = vmul.f32 %v654, 0.044715
    %v719 = vmul.f32 %v655, 0.044715
    %v720 = vmul.f32 %v656, 0.044715
    %v721 = vmul.f32 %v657, 0.044715
    %v722 = vmul.f32 %v658, 0.044715
    %v723 = vmul.f32 %v659, 0.044715
    %v724 = vmul.f32 %v660, 0.044715
    %v725 = vmul.f32 %v661, 0.044715
    %v726 = vmul.f32 %v662, 0.044715
    %v727 = vmul.f32 %v663, 0.044715
    %v728 = vmul.f32 %v664, 0.044715
    %v729 = vmul.f32 %v665, 0.044715
    %v730 = vmul.f32 %v666, 0.044715
    %v731 = vmul.f32 %v667, 0.044715
    %v732 = vmul.f32 %v668, 0.044715
    %v733 = vmul.f32 %v669, 0.044715
    %v734 = vmul.f32 %v670, 0.044715
    %v735 = vmul.f32 %v671, 0.044715
    %v736 = vmul.f32 %v672, 0.044715
    %v737 = vmul.f32 %v673, 0.044715
    %v738 = vmul.f32 %v674, 0.044715
    %v739 = vmul.f32 %v675, 0.044715
    %v740 = vadd.f32 %v484, %v676
    %v741 = vadd.f32 %v485, %v677
    %v742 = vadd.f32 %v486, %v678
    %v743 = vadd.f32 %v487, %v679
    %v744 = vadd.f32 %v488, %v680
    %v745 = vadd.f32 %v489, %v681
    %v746 = vadd.f32 %v490, %v682
    %v747 = vadd.f32 %v491, %v683
    %v748 = vadd.f32 %v492, %v684
    %v749 = vadd.f32 %v493, %v685
    %v750 = vadd.f32 %v494, %v686
    %v751 = vadd.f32 %v495, %v687
    %v752 = vadd.f32 %v496, %v688
    %v753 = vadd.f32 %v497, %v689
    %v754 = vadd.f32 %v498, %v690
    %v755 = vadd.f32 %v499, %v691
    %v756 = vadd.f32 %v500, %v692
    %v757 = vadd.f32 %v501, %v693
    %v758 = vadd.f32 %v502, %v694
    %v759 = vadd.f32 %v503, %v695
    %v760 = vadd.f32 %v504, %v696
    %v761 = vadd.f32 %v505, %v697
    %v762 = vadd.f32 %v506, %v698
    %v763 = vadd.f32 %v507, %v699
    %v764 = vadd.f32 %v508, %v700
    %v765 = vadd.f32 %v509, %v701
    %v766 = vadd.f32 %v510, %v702
    %v767 = vadd.f32 %v511, %v703
    %v768 = vadd.f32 %v512, %v704
    %v769 = vadd.f32 %v513, %v705
    %v770 = vadd.f32 %v514, %v706
    %v771 = vadd.f32 %v515, %v707
    %v772 = vadd.f32 %v516, %v708
    %v773 = vadd.f32 %v517, %v709
    %v774 = vadd.f32 %v518, %v710
    %v775 = vadd.f32 %v519, %v711
    %v776 = vadd.f32 %v520, %v712
    %v777 = vadd.f32 %v521, %v713
    %v778 = vadd.f32 %v522, %v714
    %v779 = vadd.f32 %v523, %v715
    %v780 = vadd.f32 %v524, %v716
    %v781 = vadd.f32 %v525, %v717
    %v782 = vadd.f32 %v526, %v718
    %v783 = vadd.f32 %v527, %v719
    %v784 = vadd.f32 %v528, %v720
    %v785 = vadd.f32 %v529, %v721
    %v786 = vadd.f32 %v530, %v722
    %v787 = vadd.f32 %v531, %v723
    %v788 = vadd.f32 %v532, %v724
    %v789 = vadd.f32 %v533, %v725
    %v790 = vadd.f32 %v534, %v726
    %v791 = vadd.f32 %v535, %v727
    %v792 = vadd.f32 %v536, %v728
    %v793 = vadd.f32 %v537, %v729
    %v794 = vadd.f32 %v538, %v730
    %v795 = vadd.f32 %v539, %v731
    %v796 = vadd.f32 %v540, %v732
    %v797 = vadd.f32 %v541, %v733
    %v798 = vadd.f32 %v542, %v734
    %v799 = vadd.f32 %v543, %v735
    %v800 = vadd.f32 %v544, %v736
    %v801 = vadd.f32 %v545, %v737
    %v802 = vadd.f32 %v546, %v738
    %v803 = vadd.f32 %v547, %v739
    %v804 = vmul.f32 %v740, 0.7978846
    %v805 = vmul.f32 %v741, 0.7978846
    %v806 = vmul.f32 %v742, 0.7978846
    %v807 = vmul.f32 %v743, 0.7978846
    %v808 = vmul.f32 %v744, 0.7978846
    %v809 = vmul.f32 %v745, 0.7978846
    %v810 = vmul.f32 %v746, 0.7978846
    %v811 = vmul.f32 %v747, 0.7978846
    %v812 = vmul.f32 %v748, 0.7978846
    %v813 = vmul.f32 %v749, 0.7978846
    %v814 = vmul.f32 %v750, 0.7978846
    %v815 = vmul.f32 %v751, 0.7978846
    %v816 = vmul.f32 %v752, 0.7978846
    %v817 = vmul.f32 %v753, 0.7978846
    %v818 = vmul.f32 %v754, 0.7978846
    %v819 = vmul.f32 %v755, 0.7978846
    %v820 = vmul.f32 %v756, 0.7978846
    %v821 = vmul.f32 %v757, 0.7978846
    %v822 = vmul.f32 %v758, 0.7978846
    %v823 = vmul.f32 %v759, 0.7978846
    %v824 = vmul.f32 %v760, 0.7978846
    %v825 = vmul.f32 %v761, 0.7978846
    %v826 = vmul.f32 %v762, 0.7978846
    %v827 = vmul.f32 %v763, 0.7978846
    %v828 = vmul.f32 %v764, 0.7978846
    %v829 = vmul.f32 %v765, 0.7978846
    %v830 = vmul.f32 %v766, 0.7978846
    %v831 = vmul.f32 %v767, 0.7978846
    %v832 = vmul.f32 %v768, 0.7978846
    %v833 = vmul.f32 %v769, 0.7978846
    %v834 = vmul.f32 %v770, 0.7978846
    %v835 = vmul.f32 %v771, 0.7978846
    %v836 = vmul.f32 %v772, 0.7978846
    %v837 = vmul.f32 %v773, 0.7978846
    %v838 = vmul.f32 %v774, 0.7978846
    %v839 = vmul.f32 %v775, 0.7978846
    %v840 = vmul.f32 %v776, 0.7978846
    %v841 = vmul.f32 %v777, 0.7978846
    %v842 = vmul.f32 %v778, 0.7978846
    %v843 = vmul.f32 %v779, 0.7978846
    %v844 = vmul.f32 %v780, 0.7978846
    %v845 = vmul.f32 %v781, 0.7978846
    %v846 = vmul.f32 %v782, 0.7978846
    %v847 = vmul.f32 %v783, 0.7978846
    %v848 = vmul.f32 %v784, 0.7978846
    %v849 = vmul.f32 %v785, 0.7978846
    %v850 = vmul.f32 %v786, 0.7978846
    %v851 = vmul.f32 %v787, 0.7978846
    %v852 = vmul.f32 %v788, 0.7978846
    %v853 = vmul.f32 %v789, 0.7978846
    %v854 = vmul.f32 %v790, 0.7978846
    %v855 = vmul.f32 %v791, 0.7978846
    %v856 = vmul.f32 %v792, 0.7978846
    %v857 = vmul.f32 %v793, 0.7978846
    %v858 = vmul.f32 %v794, 0.7978846
    %v859 = vmul.f32 %v795, 0.7978846
    %v860 = vmul.f32 %v796, 0.7978846
    %v861 = vmul.f32 %v797, 0.7978846
    %v862 = vmul.f32 %v798, 0.7978846
    %v863 = vmul.f32 %v799, 0.7978846
    %v864 = vmul.f32 %v800, 0.7978846
    %v865 = vmul.f32 %v801, 0.7978846
    %v866 = vmul.f32 %v802, 0.7978846
    %v867 = vmul.f32 %v803, 0.7978846
    %v868 = vtanh.pop %v804
    %v869 = vtanh.pop %v805
    %v870 = vtanh.pop %v806
    %v871 = vtanh.pop %v807
    %v872 = vtanh.pop %v808
    %v873 = vtanh.pop %v809
    %v874 = vtanh.pop %v810
    %v875 = vtanh.pop %v811
    %v876 = vtanh.pop %v812
    %v877 = vtanh.pop %v813
    %v878 = vtanh.pop %v814
    %v879 = vtanh.pop %v815
    %v880 = vtanh.pop %v816
    %v881 = vtanh.pop %v817
    %v882 = vtanh.pop %v818
    %v883 = vtanh.pop %v819
    %v884 = vtanh.pop %v820
    %v885 = vtanh.pop %v821
    %v886 = vtanh.pop %v822
    %v887 = vtanh.pop %v823
    %v888 = vtanh.pop %v824
    %v889 = vtanh.pop %v825
    %v890 = vtanh.pop %v826
    %v891 = vtanh.pop %v827
    %v892 = vtanh.pop %v828
    %v893 = vtanh.pop %v829
    %v894 = vtanh.pop %v830
    %v895 = vtanh.pop %v831
    %v896 = vtanh.pop %v832
    %v897 = vtanh.pop %v833
    %v898 = vtanh.pop %v834
    %v899 = vtanh.pop %v835
    %v900 = vtanh.pop %v836
    %v901 = vtanh.pop %v837
    %v902 = vtanh.pop %v838
    %v903 = vtanh.pop %v839
    %v904 = vtanh.pop %v840
    %v905 = vtanh.pop %v841
    %v906 = vtanh.pop %v842
    %v907 = vtanh.pop %v843
    %v908 = vtanh.pop %v844
    %v909 = vtanh.pop %v845
    %v910 = vtanh.pop %v846
    %v911 = vtanh.pop %v847
    %v912 = vtanh.pop %v848
    %v913 = vtanh.pop %v849
    %v914 = vtanh.pop %v850
    %v915 = vtanh.pop %v851
    %v916 = vtanh.pop %v852
    %v917 = vtanh.pop %v853
    %v918 = vtanh.pop %v854
    %v919 = vtanh.pop %v855
    %v920 = vtanh.pop %v856
    %v921 = vtanh.pop %v857
    %v922 = vtanh.pop %v858
    %v923 = vtanh.pop %v859
    %v924 = vtanh.pop %v860
    %v925 = vtanh.pop %v861
    %v926 = vtanh.pop %v862
    %v927 = vtanh.pop %v863
    %v928 = vtanh.pop %v864
    %v929 = vtanh.pop %v865
    %v930 = vtanh.pop %v866
    %v931 = vtanh.pop %v867
    %v932 = vadd.f32 %v868, 1.0
    %v933 = vadd.f32 %v869, 1.0
    %v934 = vadd.f32 %v870, 1.0
    %v935 = vadd.f32 %v871, 1.0
    %v936 = vadd.f32 %v872, 1.0
    %v937 = vadd.f32 %v873, 1.0
    %v938 = vadd.f32 %v874, 1.0
    %v939 = vadd.f32 %v875, 1.0
    %v940 = vadd.f32 %v876, 1.0
    %v941 = vadd.f32 %v877, 1.0
    %v942 = vadd.f32 %v878, 1.0
    %v943 = vadd.f32 %v879, 1.0
    %v944 = vadd.f32 %v880, 1.0
    %v945 = vadd.f32 %v881, 1.0
    %v946 = vadd.f32 %v882, 1.0
    %v947 = vadd.f32 %v883, 1.0
    %v948 = vadd.f32 %v884, 1.0
    %v949 = vadd.f32 %v885, 1.0
    %v950 = vadd.f32 %v886, 1.0
    %v951 = vadd.f32 %v887, 1.0
    %v952 = vadd.f32 %v888, 1.0
    %v953 = vadd.f32 %v889, 1.0
    %v954 = vadd.f32 %v890, 1.0
    %v955 = vadd.f32 %v891, 1.0
    %v956 = vadd.f32 %v892, 1.0
    %v957 = vadd.f32 %v893, 1.0
    %v958 = vadd.f32 %v894, 1.0
    %v959 = vadd.f32 %v895, 1.0
    %v960 = vadd.f32 %v896, 1.0
    %v961 = vadd.f32 %v897, 1.0
    %v962 = vadd.f32 %v898, 1.0
    %v963 = vadd.f32 %v899, 1.0
    %v964 = vadd.f32 %v900, 1.0
    %v965 = vadd.f32 %v901, 1.0
    %v966 = vadd.f32 %v902, 1.0
    %v967 = vadd.f32 %v903, 1.0
    %v968 = vadd.f32 %v904, 1.0
    %v969 = vadd.f32 %v905, 1.0
    %v970 = vadd.f32 %v906, 1.0
    %v971 = vadd.f32 %v907, 1.0
    %v972 = vadd.f32 %v908, 1.0
    %v973 = vadd.f32 %v909, 1.0
    %v974 = vadd.f32 %v910, 1.0
    %v975 = vadd.f32 %v911, 1.0
    %v976 = vadd.f32 %v912, 1.0
    %v977 = vadd.f32 %v913, 1.0
    %v978 = vadd.f32 %v914, 1.0
    %v979 = vadd.f32 %v915, 1.0
    %v980 = vadd.f32 %v916, 1.0
    %v981 = vadd.f32 %v917, 1.0
    %v982 = vadd.f32 %v918, 1.0
    %v983 = vadd.f32 %v919, 1.0
    %v984 = vadd.f32 %v920, 1.0
    %v985 = vadd.f32 %v921, 1.0
    %v986 = vadd.f32 %v922, 1.0
    %v987 = vadd.f32 %v923, 1.0
    %v988 = vadd.f32 %v924, 1.0
    %v989 = vadd.f32 %v925, 1.0
    %v990 = vadd.f32 %v926, 1.0
    %v991 = vadd.f32 %v927, 1.0
    %v992 = vadd.f32 %v928, 1.0
    %v993 = vadd.f32 %v929, 1.0
    %v994 = vadd.f32 %v930, 1.0
    %v995 = vadd.f32 %v931, 1.0
    %v996 = vmul.f32 %v932, 0.5
    %v997 = vmul.f32 %v933, 0.5
    %v998 = vmul.f32 %v934, 0.5
    %v999 = vmul.f32 %v935, 0.5
    %v1000 = vmul.f32 %v936, 0.5
    %v1001 = vmul.f32 %v937, 0.5
    %v1002 = vmul.f32 %v938, 0.5
    %v1003 = vmul.f32 %v939, 0.5
    %v1004 = vmul.f32 %v940, 0.5
    %v1005 = vmul.f32 %v941, 0.5
    %v1006 = vmul.f32 %v942, 0.5
    %v1007 = vmul.f32 %v943, 0.5
    %v1008 = vmul.f32 %v944, 0.5
    %v1009 = vmul.f32 %v945, 0.5
    %v1010 = vmul.f32 %v946, 0.5
    %v1011 = vmul.f32 %v947, 0.5
    %v1012 = vmul.f32 %v948, 0.5
    %v1013 = vmul.f32 %v949, 0.5
    %v1014 = vmul.f32 %v950, 0.5
    %v1015 = vmul.f32 %v951, 0.5
    %v1016 = vmul.f32 %v952, 0.5
    %v1017 = vmul.f32 %v953, 0.5
    %v1018 = vmul.f32 %v954, 0.5
    %v1019 = vmul.f32 %v955, 0.5
    %v1020 = vmul.f32 %v956, 0.5
    %v1021 = vmul.f32 %v957, 0.5
    %v1022 = vmul.f32 %v958, 0.5
    %v1023 = vmul.f32 %v959, 0.5
    %v1024 = vmul.f32 %v960, 0.5
    %v1025 = vmul.f32 %v961, 0.5
    %v1026 = vmul.f32 %v962, 0.5
    %v1027 = vmul.f32 %v963, 0.5
    %v1028 = vmul.f32 %v964, 0.5
    %v1029 = vmul.f32 %v965, 0.5
    %v1030 = vmul.f32 %v966, 0.5
    %v1031 = vmul.f32 %v967, 0.5
    %v1032 = vmul.f32 %v968, 0.5
    %v1033 = vmul.f32 %v969, 0.5
    %v1034 = vmul.f32 %v970, 0.5
    %v1035 = vmul.f32 %v971, 0.5
    %v1036 = vmul.f32 %v972, 0.5
    %v1037 = vmul.f32 %v973, 0.5
    %v1038 = vmul.f32 %v974, 0.5
    %v1039 = vmul.f32 %v975, 0.5
    %v1040 = vmul.f32 %v976, 0.5
    %v1041 = vmul.f32 %v977, 0.5
    %v1042 = vmul.f32 %v978, 0.5
    %v1043 = vmul.f32 %v979, 0.5
    %v1044 = vmul.f32 %v980, 0.5
    %v1045 = vmul.f32 %v981, 0.5
    %v1046 = vmul.f32 %v982, 0.5
    %v1047 = vmul.f32 %v983, 0.5
    %v1048 = vmul.f32 %v984, 0.5
    %v1049 = vmul.f32 %v985, 0.5
    %v1050 = vmul.f32 %v986, 0.5
    %v1051 = vmul.f32 %v987, 0.5
    %v1052 = vmul.f32 %v988, 0.5
    %v1053 = vmul.f32 %v989, 0.5
    %v1054 = vmul.f32 %v990, 0.5
    %v1055 = vmul.f32 %v991, 0.5
    %v1056 = vmul.f32 %v992, 0.5
    %v1057 = vmul.f32 %v993, 0.5
    %v1058 = vmul.f32 %v994, 0.5
    %v1059 = vmul.f32 %v995, 0.5
    %v1060 = vmul.f32 %v484, %v996
    %v1061 = vmul.f32 %v485, %v997
    %v1062 = vmul.f32 %v486, %v998
    %v1063 = vmul.f32 %v487, %v999
    %v1064 = vmul.f32 %v488, %v1000
    %v1065 = vmul.f32 %v489, %v1001
    %v1066 = vmul.f32 %v490, %v1002
    %v1067 = vmul.f32 %v491, %v1003
    %v1068 = vmul.f32 %v492, %v1004
    %v1069 = vmul.f32 %v493, %v1005
    %v1070 = vmul.f32 %v494, %v1006
    %v1071 = vmul.f32 %v495, %v1007
    %v1072 = vmul.f32 %v496, %v1008
    %v1073 = vmul.f32 %v497, %v1009
    %v1074 = vmul.f32 %v498, %v1010
    %v1075 = vmul.f32 %v499, %v1011
    %v1076 = vmul.f32 %v500, %v1012
    %v1077 = vmul.f32 %v501, %v1013
    %v1078 = vmul.f32 %v502, %v1014
    %v1079 = vmul.f32 %v503, %v1015
    %v1080 = vmul.f32 %v504, %v1016
    %v1081 = vmul.f32 %v505, %v1017
    %v1082 = vmul.f32 %v506, %v1018
    %v1083 = vmul.f32 %v507, %v1019
    %v1084 = vmul.f32 %v508, %v1020
    %v1085 = vmul.f32 %v509, %v1021
    %v1086 = vmul.f32 %v510, %v1022
    %v1087 = vmul.f32 %v511, %v1023
    %v1088 = vmul.f32 %v512, %v1024
    %v1089 = vmul.f32 %v513, %v1025
    %v1090 = vmul.f32 %v514, %v1026
    %v1091 = vmul.f32 %v515, %v1027
    %v1092 = vmul.f32 %v516, %v1028
    %v1093 = vmul.f32 %v517, %v1029
    %v1094 = vmul.f32 %v518, %v1030
    %v1095 = vmul.f32 %v519, %v1031
    %v1096 = vmul.f32 %v520, %v1032
    %v1097 = vmul.f32 %v521, %v1033
    %v1098 = vmul.f32 %v522, %v1034
    %v1099 = vmul.f32 %v523, %v1035
    %v1100 = vmul.f32 %v524, %v1036
    %v1101 = vmul.f32 %v525, %v1037
    %v1102 = vmul.f32 %v526, %v1038
    %v1103 = vmul.f32 %v527, %v1039
    %v1104 = vmul.f32 %v528, %v1040
    %v1105 = vmul.f32 %v529, %v1041
    %v1106 = vmul.f32 %v530, %v1042
    %v1107 = vmul.f32 %v531, %v1043
    %v1108 = vmul.f32 %v532, %v1044
    %v1109 = vmul.f32 %v533, %v1045
    %v1110 = vmul.f32 %v534, %v1046
    %v1111 = vmul.f32 %v535, %v1047
    %v1112 = vmul.f32 %v536, %v1048
    %v1113 = vmul.f32 %v537, %v1049
    %v1114 = vmul.f32 %v538, %v1050
    %v1115 = vmul.f32 %v539, %v1051
    %v1116 = vmul.f32 %v540, %v1052
    %v1117 = vmul.f32 %v541, %v1053
    %v1118 = vmul.f32 %v542, %v1054
    %v1119 = vmul.f32 %v543, %v1055
    %v1120 = vmul.f32 %v544, %v1056
    %v1121 = vmul.f32 %v545, %v1057
    %v1122 = vmul.f32 %v546, %v1058
    %v1123 = vmul.f32 %v547, %v1059
    %v1124 = vpack.c.bf16 %v1061, %v1060
    %v1125 = vpack.c.bf16 %v1063, %v1062
    %v1126 = vpack.c.bf16 %v1065, %v1064
    %v1127 = vpack.c.bf16 %v1067, %v1066
    %v1128 = vpack.c.bf16 %v1069, %v1068
    %v1129 = vpack.c.bf16 %v1071, %v1070
    %v1130 = vpack.c.bf16 %v1073, %v1072
    %v1131 = vpack.c.bf16 %v1075, %v1074
    %v1132 = vpack.c.bf16 %v1077, %v1076
    %v1133 = vpack.c.bf16 %v1079, %v1078
    %v1134 = vpack.c.bf16 %v1081, %v1080
    %v1135 = vpack.c.bf16 %v1083, %v1082
    %v1136 = vpack.c.bf16 %v1085, %v1084
    %v1137 = vpack.c.bf16 %v1087, %v1086
    %v1138 = vpack.c.bf16 %v1089, %v1088
    %v1139 = vpack.c.bf16 %v1091, %v1090
    %v1140 = vpack.c.bf16 %v1093, %v1092
    %v1141 = vpack.c.bf16 %v1095, %v1094
    %v1142 = vpack.c.bf16 %v1097, %v1096
    %v1143 = vpack.c.bf16 %v1099, %v1098
    %v1144 = vpack.c.bf16 %v1101, %v1100
    %v1145 = vpack.c.bf16 %v1103, %v1102
    %v1146 = vpack.c.bf16 %v1105, %v1104
    %v1147 = vpack.c.bf16 %v1107, %v1106
    %v1148 = vpack.c.bf16 %v1109, %v1108
    %v1149 = vpack.c.bf16 %v1111, %v1110
    %v1150 = vpack.c.bf16 %v1113, %v1112
    %v1151 = vpack.c.bf16 %v1115, %v1114
    %v1152 = vpack.c.bf16 %v1117, %v1116
    %v1153 = vpack.c.bf16 %v1119, %v1118
    %v1154 = vpack.c.bf16 %v1121, %v1120
    %v1155 = vpack.c.bf16 %v1123, %v1122
    %v1156 = vld [vmem:[%s3] sm:$0xf]
    %v1157 = vld [vmem:[%s3 + $0x4] sm:$0xf]
    %v1158 = vld [vmem:[%s3 + $0x8] sm:$0xf]
    %v1159 = vld [vmem:[%s3 + $0xc] sm:$0xf]
    %v1160 = vld [vmem:[%s3 + $0x10] sm:$0xf]
    %v1161 = vld [vmem:[%s3 + $0x14] sm:$0xf]
    %v1162 = vld [vmem:[%s3 + $0x18] sm:$0xf]
    %v1163 = vld [vmem:[%s3 + $0x1c] sm:$0xf]
    %v1164 = vld [vmem:[%s3 + $0x20] sm:$0xf]
    %v1165 = vld [vmem:[%s3 + $0x24] sm:$0xf]
    %v1166 = vld [vmem:[%s3 + $0x28] sm:$0xf]
    %v1167 = vld [vmem:[%s3 + $0x2c] sm:$0xf]
    %v1168 = vld [vmem:[%s3 + $0x30] sm:$0xf]
    %v1169 = vld [vmem:[%s3 + $0x34] sm:$0xf]
    %v1170 = vld [vmem:[%s3 + $0x38] sm:$0xf]
    %v1171 = vld [vmem:[%s3 + $0x3c] sm:$0xf]
    %v1172 = vld [vmem:[%s4] sm:$0x1]
    %v1174 = vlaneseq
    %v1175 = vshrl.u32 %v1174, 7
    %v1176 = vsub.s32 0, %v1175
    %v1177 = vrot.slane %v1172, %v1176
    %v1195 = vunpack.c.l.b16 %v1156
    %v1196 = vunpack.c.l.b16 %v1157
    %v1197 = vunpack.c.l.b16 %v1158
    %v1198 = vunpack.c.l.b16 %v1159
    %v1199 = vunpack.c.l.b16 %v1160
    %v1200 = vunpack.c.l.b16 %v1161
    %v1201 = vunpack.c.l.b16 %v1162
    %v1202 = vunpack.c.l.b16 %v1163
    %v1203 = vunpack.c.l.b16 %v1164
    %v1204 = vunpack.c.l.b16 %v1165
    %v1205 = vunpack.c.l.b16 %v1166
    %v1206 = vunpack.c.l.b16 %v1167
    %v1207 = vunpack.c.l.b16 %v1168
    %v1208 = vunpack.c.l.b16 %v1169
    %v1209 = vunpack.c.l.b16 %v1170
    %v1210 = vunpack.c.l.b16 %v1171
    %v1211 = vpack.c.b16 %v1196, %v1195
    %v1212 = vpack.c.b16 %v1198, %v1197
    %v1213 = vpack.c.b16 %v1200, %v1199
    %v1214 = vpack.c.b16 %v1202, %v1201
    %v1215 = vpack.c.b16 %v1204, %v1203
    %v1216 = vpack.c.b16 %v1206, %v1205
    %v1217 = vpack.c.b16 %v1208, %v1207
    %v1218 = vpack.c.b16 %v1210, %v1209
    %1227 = vmatprep.subr.bf16.mxu0 0
    %1228 = vmatpush1.bf16.msra.mxu0 %v1218
    %1229 = vmatprep.subr.bf16.mxu0 0
    %1230 = vmatpush1.bf16.msra.mxu0 %v1217
    %1231 = vmatprep.subr.bf16.mxu0 0
    %1232 = vmatpush1.bf16.msra.mxu0 %v1216
    %1233 = vmatprep.subr.bf16.mxu0 0
    %1234 = vmatpush1.bf16.msra.mxu0 %v1215
    %1235 = vmatprep.subr.bf16.mxu0 0
    %1236 = vmatpush1.bf16.msra.mxu0 %v1214
    %1237 = vmatprep.subr.bf16.mxu0 0
    %1238 = vmatpush1.bf16.msra.mxu0 %v1213
    %1239 = vmatprep.subr.bf16.mxu0 0
    %1240 = vmatpush1.bf16.msra.mxu0 %v1212
    %1241 = vmatprep.subr.bf16.mxu0 0
    %1242 = vmatpush1.bf16.msra.mxu0 %v1211
    %1243 = vmatprep.subr.bf16.mxu0 0
    %1244 = vmatpush2.bf16.msra.mxu0 0
    %1245 = vmatprep.subr.bf16.mxu0 0
    %1246 = vmatpush2.bf16.msra.mxu0 0
    %1247 = vmatprep.subr.bf16.mxu0 0
    %1248 = vmatpush2.bf16.msra.mxu0 0
    %1249 = vmatprep.subr.bf16.mxu0 0
    %1250 = vmatpush2.bf16.msra.mxu0 0
    %1251 = vmatprep.subr.bf16.mxu0 0
    %1252 = vmatpush2.bf16.msra.mxu0 0
    %1253 = vmatprep.subr.bf16.mxu0 0
    %1254 = vmatpush2.bf16.msra.mxu0 0
    %1255 = vmatprep.subr.bf16.mxu0 0
    %1256 = vmatpush2.bf16.msra.mxu0 0
    %1257 = vmatprep.subr.bf16.mxu0 0
    %1258 = vmatpush2.bf16.msra.mxu0 0
    %1259 = vmatprep.mubr.bf16.mxu0 0
    %1260 = vmatmul.mubr.bf16.gmra.mxu0 %v1124
    %v1261 = vpop.f32.mrf.mxu0
    %v1262 = vadd.f32 %v1177, %v1261
    %v1263 = vpop.f32.mrf.mxu0
    %v1264 = vpop.f32.mrf.mxu0
    %v1265 = vadd.f32 %v1177, %v1264
    %v1266 = vpop.f32.mrf.mxu0
    %1267 = vmatprep.mubr.bf16.mxu0 0
    %1268 = vmatmul.mubr.bf16.gmra.mxu0 %v1125
    %v1269 = vpop.f32.mrf.mxu0
    %v1270 = vadd.f32 %v1177, %v1269
    %v1271 = vpop.f32.mrf.mxu0
    %v1272 = vpop.f32.mrf.mxu0
    %v1273 = vadd.f32 %v1177, %v1272
    %v1274 = vpop.f32.mrf.mxu0
    %1275 = vmatprep.mubr.bf16.mxu0 0
    %1276 = vmatmul.mubr.bf16.gmra.mxu0 %v1126
    %v1277 = vpop.f32.mrf.mxu0
    %v1278 = vadd.f32 %v1177, %v1277
    %v1279 = vpop.f32.mrf.mxu0
    %v1280 = vpop.f32.mrf.mxu0
    %v1281 = vadd.f32 %v1177, %v1280
    %v1282 = vpop.f32.mrf.mxu0
    %1283 = vmatprep.mubr.bf16.mxu0 0
    %1284 = vmatmul.mubr.bf16.gmra.mxu0 %v1127
    %v1285 = vpop.f32.mrf.mxu0
    %v1286 = vadd.f32 %v1177, %v1285
    %v1287 = vpop.f32.mrf.mxu0
    %v1288 = vpop.f32.mrf.mxu0
    %v1289 = vadd.f32 %v1177, %v1288
    %v1290 = vpop.f32.mrf.mxu0
    %1291 = vmatprep.mubr.bf16.mxu0 0
    %1292 = vmatmul.mubr.bf16.gmra.mxu0 %v1128
    %v1293 = vpop.f32.mrf.mxu0
    %v1294 = vadd.f32 %v1177, %v1293
    %v1295 = vpop.f32.mrf.mxu0
    %v1296 = vpop.f32.mrf.mxu0
    %v1297 = vadd.f32 %v1177, %v1296
    %v1298 = vpop.f32.mrf.mxu0
    %1299 = vmatprep.mubr.bf16.mxu0 0
    %1300 = vmatmul.mubr.bf16.gmra.mxu0 %v1129
    %v1301 = vpop.f32.mrf.mxu0
    %v1302 = vadd.f32 %v1177, %v1301
    %v1303 = vpop.f32.mrf.mxu0
    %v1304 = vpop.f32.mrf.mxu0
    %v1305 = vadd.f32 %v1177, %v1304
    %v1306 = vpop.f32.mrf.mxu0
    %1307 = vmatprep.mubr.bf16.mxu0 0
    %1308 = vmatmul.mubr.bf16.gmra.mxu0 %v1130
    %v1309 = vpop.f32.mrf.mxu0
    %v1310 = vadd.f32 %v1177, %v1309
    %v1311 = vpop.f32.mrf.mxu0
    %v1312 = vpop.f32.mrf.mxu0
    %v1313 = vadd.f32 %v1177, %v1312
    %v1314 = vpop.f32.mrf.mxu0
    %1315 = vmatprep.mubr.bf16.mxu0 0
    %1316 = vmatmul.mubr.bf16.gmra.mxu0 %v1131
    %v1317 = vpop.f32.mrf.mxu0
    %v1318 = vadd.f32 %v1177, %v1317
    %v1319 = vpop.f32.mrf.mxu0
    %v1320 = vpop.f32.mrf.mxu0
    %v1321 = vadd.f32 %v1177, %v1320
    %v1322 = vpop.f32.mrf.mxu0
    %1323 = vmatprep.mubr.bf16.mxu0 0
    %1324 = vmatmul.mubr.bf16.gmra.mxu0 %v1132
    %v1325 = vpop.f32.mrf.mxu0
    %v1326 = vadd.f32 %v1177, %v1325
    %v1327 = vpop.f32.mrf.mxu0
    %v1328 = vpop.f32.mrf.mxu0
    %v1329 = vadd.f32 %v1177, %v1328
    %v1330 = vpop.f32.mrf.mxu0
    %1331 = vmatprep.mubr.bf16.mxu0 0
    %1332 = vmatmul.mubr.bf16.gmra.mxu0 %v1133
    %v1333 = vpop.f32.mrf.mxu0
    %v1334 = vadd.f32 %v1177, %v1333
    %v1335 = vpop.f32.mrf.mxu0
    %v1336 = vpop.f32.mrf.mxu0
    %v1337 = vadd.f32 %v1177, %v1336
    %v1338 = vpop.f32.mrf.mxu0
    %1339 = vmatprep.mubr.bf16.mxu0 0
    %1340 = vmatmul.mubr.bf16.gmra.mxu0 %v1134
    %v1341 = vpop.f32.mrf.mxu0
    %v1342 = vadd.f32 %v1177, %v1341
    %v1343 = vpop.f32.mrf.mxu0
    %v1344 = vpop.f32.mrf.mxu0
    %v1345 = vadd.f32 %v1177, %v1344
    %v1346 = vpop.f32.mrf.mxu0
    %1347 = vmatprep.mubr.bf16.mxu0 0
    %1348 = vmatmul.mubr.bf16.gmra.mxu0 %v1135
    %v1349 = vpop.f32.mrf.mxu0
    %v1350 = vadd.f32 %v1177, %v1349
    %v1351 = vpop.f32.mrf.mxu0
    %v1352 = vpop.f32.mrf.mxu0
    %v1353 = vadd.f32 %v1177, %v1352
    %v1354 = vpop.f32.mrf.mxu0
    %1355 = vmatprep.mubr.bf16.mxu0 0
    %1356 = vmatmul.mubr.bf16.gmra.mxu0 %v1136
    %v1357 = vpop.f32.mrf.mxu0
    %v1358 = vadd.f32 %v1177, %v1357
    %v1359 = vpop.f32.mrf.mxu0
    %v1360 = vpop.f32.mrf.mxu0
    %v1361 = vadd.f32 %v1177, %v1360
    %v1362 = vpop.f32.mrf.mxu0
    %1363 = vmatprep.mubr.bf16.mxu0 0
    %1364 = vmatmul.mubr.bf16.gmra.mxu0 %v1137
    %v1365 = vpop.f32.mrf.mxu0
    %v1366 = vadd.f32 %v1177, %v1365
    %v1367 = vpop.f32.mrf.mxu0
    %v1368 = vpop.f32.mrf.mxu0
    %v1369 = vadd.f32 %v1177, %v1368
    %v1370 = vpop.f32.mrf.mxu0
    %1371 = vmatprep.mubr.bf16.mxu0 0
    %1372 = vmatmul.mubr.bf16.gmra.mxu0 %v1138
    %v1373 = vpop.f32.mrf.mxu0
    %v1374 = vadd.f32 %v1177, %v1373
    %v1375 = vpop.f32.mrf.mxu0
    %v1376 = vpop.f32.mrf.mxu0
    %v1377 = vadd.f32 %v1177, %v1376
    %v1378 = vpop.f32.mrf.mxu0
    %1379 = vmatprep.mubr.bf16.mxu0 0
    %1380 = vmatmul.mubr.bf16.gmra.mxu0 %v1139
    %v1381 = vpop.f32.mrf.mxu0
    %v1382 = vadd.f32 %v1177, %v1381
    %v1383 = vpop.f32.mrf.mxu0
    %v1384 = vpop.f32.mrf.mxu0
    %v1385 = vadd.f32 %v1177, %v1384
    %v1386 = vpop.f32.mrf.mxu0
    %1387 = vmatprep.mubr.bf16.mxu0 0
    %1388 = vmatmul.mubr.bf16.gmra.mxu0 %v1140
    %v1389 = vpop.f32.mrf.mxu0
    %v1390 = vadd.f32 %v1177, %v1389
    %v1391 = vpop.f32.mrf.mxu0
    %v1392 = vpop.f32.mrf.mxu0
    %v1393 = vadd.f32 %v1177, %v1392
    %v1394 = vpop.f32.mrf.mxu0
    %1395 = vmatprep.mubr.bf16.mxu0 0
    %1396 = vmatmul.mubr.bf16.gmra.mxu0 %v1141
    %v1397 = vpop.f32.mrf.mxu0
    %v1398 = vadd.f32 %v1177, %v1397
    %v1399 = vpop.f32.mrf.mxu0
    %v1400 = vpop.f32.mrf.mxu0
    %v1401 = vadd.f32 %v1177, %v1400
    %v1402 = vpop.f32.mrf.mxu0
    %1403 = vmatprep.mubr.bf16.mxu0 0
    %1404 = vmatmul.mubr.bf16.gmra.mxu0 %v1142
    %v1405 = vpop.f32.mrf.mxu0
    %v1406 = vadd.f32 %v1177, %v1405
    %v1407 = vpop.f32.mrf.mxu0
    %v1408 = vpop.f32.mrf.mxu0
    %v1409 = vadd.f32 %v1177, %v1408
    %v1410 = vpop.f32.mrf.mxu0
    %1411 = vmatprep.mubr.bf16.mxu0 0
    %1412 = vmatmul.mubr.bf16.gmra.mxu0 %v1143
    %v1413 = vpop.f32.mrf.mxu0
    %v1414 = vadd.f32 %v1177, %v1413
    %v1415 = vpop.f32.mrf.mxu0
    %v1416 = vpop.f32.mrf.mxu0
    %v1417 = vadd.f32 %v1177, %v1416
    %v1418 = vpop.f32.mrf.mxu0
    %1419 = vmatprep.mubr.bf16.mxu0 0
    %1420 = vmatmul.mubr.bf16.gmra.mxu0 %v1144
    %v1421 = vpop.f32.mrf.mxu0
    %v1422 = vadd.f32 %v1177, %v1421
    %v1423 = vpop.f32.mrf.mxu0
    %v1424 = vpop.f32.mrf.mxu0
    %v1425 = vadd.f32 %v1177, %v1424
    %v1426 = vpop.f32.mrf.mxu0
    %1427 = vmatprep.mubr.bf16.mxu0 0
    %1428 = vmatmul.mubr.bf16.gmra.mxu0 %v1145
    %v1429 = vpop.f32.mrf.mxu0
    %v1430 = vadd.f32 %v1177, %v1429
    %v1431 = vpop.f32.mrf.mxu0
    %v1432 = vpop.f32.mrf.mxu0
    %v1433 = vadd.f32 %v1177, %v1432
    %v1434 = vpop.f32.mrf.mxu0
    %1435 = vmatprep.mubr.bf16.mxu0 0
    %1436 = vmatmul.mubr.bf16.gmra.mxu0 %v1146
    %v1437 = vpop.f32.mrf.mxu0
    %v1438 = vadd.f32 %v1177, %v1437
    %v1439 = vpop.f32.mrf.mxu0
    %v1440 = vpop.f32.mrf.mxu0
    %v1441 = vadd.f32 %v1177, %v1440
    %v1442 = vpop.f32.mrf.mxu0
    %1443 = vmatprep.mubr.bf16.mxu0 0
    %1444 = vmatmul.mubr.bf16.gmra.mxu0 %v1147
    %v1445 = vpop.f32.mrf.mxu0
    %v1446 = vadd.f32 %v1177, %v1445
    %v1447 = vpop.f32.mrf.mxu0
    %v1448 = vpop.f32.mrf.mxu0
    %v1449 = vadd.f32 %v1177, %v1448
    %v1450 = vpop.f32.mrf.mxu0
    %1451 = vmatprep.mubr.bf16.mxu0 0
    %1452 = vmatmul.mubr.bf16.gmra.mxu0 %v1148
    %v1453 = vpop.f32.mrf.mxu0
    %v1454 = vadd.f32 %v1177, %v1453
    %v1455 = vpop.f32.mrf.mxu0
    %v1456 = vpop.f32.mrf.mxu0
    %v1457 = vadd.f32 %v1177, %v1456
    %v1458 = vpop.f32.mrf.mxu0
    %1459 = vmatprep.mubr.bf16.mxu0 0
    %1460 = vmatmul.mubr.bf16.gmra.mxu0 %v1149
    %v1461 = vpop.f32.mrf.mxu0
    %v1462 = vadd.f32 %v1177, %v1461
    %v1463 = vpop.f32.mrf.mxu0
    %v1464 = vpop.f32.mrf.mxu0
    %v1465 = vadd.f32 %v1177, %v1464
    %v1466 = vpop.f32.mrf.mxu0
    %1467 = vmatprep.mubr.bf16.mxu0 0
    %1468 = vmatmul.mubr.bf16.gmra.mxu0 %v1150
    %v1469 = vpop.f32.mrf.mxu0
    %v1470 = vadd.f32 %v1177, %v1469
    %v1471 = vpop.f32.mrf.mxu0
    %v1472 = vpop.f32.mrf.mxu0
    %v1473 = vadd.f32 %v1177, %v1472
    %v1474 = vpop.f32.mrf.mxu0
    %1475 = vmatprep.mubr.bf16.mxu0 0
    %1476 = vmatmul.mubr.bf16.gmra.mxu0 %v1151
    %v1477 = vpop.f32.mrf.mxu0
    %v1478 = vadd.f32 %v1177, %v1477
    %v1479 = vpop.f32.mrf.mxu0
    %v1480 = vpop.f32.mrf.mxu0
    %v1481 = vadd.f32 %v1177, %v1480
    %v1482 = vpop.f32.mrf.mxu0
    %1483 = vmatprep.mubr.bf16.mxu0 0
    %1484 = vmatmul.mubr.bf16.gmra.mxu0 %v1152
    %v1485 = vpop.f32.mrf.mxu0
    %v1486 = vadd.f32 %v1177, %v1485
    %v1487 = vpop.f32.mrf.mxu0
    %v1488 = vpop.f32.mrf.mxu0
    %v1489 = vadd.f32 %v1177, %v1488
    %v1490 = vpop.f32.mrf.mxu0
    %1491 = vmatprep.mubr.bf16.mxu0 0
    %1492 = vmatmul.mubr.bf16.gmra.mxu0 %v1153
    %v1493 = vpop.f32.mrf.mxu0
    %v1494 = vadd.f32 %v1177, %v1493
    %v1495 = vpop.f32.mrf.mxu0
    %v1496 = vpop.f32.mrf.mxu0
    %v1497 = vadd.f32 %v1177, %v1496
    %v1498 = vpop.f32.mrf.mxu0
    %1499 = vmatprep.mubr.bf16.mxu0 0
    %1500 = vmatmul.mubr.bf16.gmra.mxu0 %v1154
    %v1501 = vpop.f32.mrf.mxu0
    %v1502 = vadd.f32 %v1177, %v1501
    %v1503 = vpop.f32.mrf.mxu0
    %v1504 = vpop.f32.mrf.mxu0
    %v1505 = vadd.f32 %v1177, %v1504
    %v1506 = vpop.f32.mrf.mxu0
    %1507 = vmatprep.mubr.bf16.mxu0 0
    %1508 = vmatmul.mubr.bf16.gmra.mxu0 %v1155
    %v1509 = vpop.f32.mrf.mxu0
    %v1510 = vadd.f32 %v1177, %v1509
    %v1511 = vpop.f32.mrf.mxu0
    %v1512 = vpop.f32.mrf.mxu0
    %v1513 = vadd.f32 %v1177, %v1512
    %v1514 = vpop.f32.mrf.mxu0
    %1515 = vdwg.mxu0
    %v1516 = vpack.c.bf16 %v1265, %v1262
    %v1517 = vpack.c.bf16 %v1273, %v1270
    %v1518 = vpack.c.bf16 %v1281, %v1278
    %v1519 = vpack.c.bf16 %v1289, %v1286
    %v1520 = vpack.c.bf16 %v1297, %v1294
    %v1521 = vpack.c.bf16 %v1305, %v1302
    %v1522 = vpack.c.bf16 %v1313, %v1310
    %v1523 = vpack.c.bf16 %v1321, %v1318
    %v1524 = vpack.c.bf16 %v1329, %v1326
    %v1525 = vpack.c.bf16 %v1337, %v1334
    %v1526 = vpack.c.bf16 %v1345, %v1342
    %v1527 = vpack.c.bf16 %v1353, %v1350
    %v1528 = vpack.c.bf16 %v1361, %v1358
    %v1529 = vpack.c.bf16 %v1369, %v1366
    %v1530 = vpack.c.bf16 %v1377, %v1374
    %v1531 = vpack.c.bf16 %v1385, %v1382
    %v1532 = vpack.c.bf16 %v1393, %v1390
    %v1533 = vpack.c.bf16 %v1401, %v1398
    %v1534 = vpack.c.bf16 %v1409, %v1406
    %v1535 = vpack.c.bf16 %v1417, %v1414
    %v1536 = vpack.c.bf16 %v1425, %v1422
    %v1537 = vpack.c.bf16 %v1433, %v1430
    %v1538 = vpack.c.bf16 %v1441, %v1438
    %v1539 = vpack.c.bf16 %v1449, %v1446
    %v1540 = vpack.c.bf16 %v1457, %v1454
    %v1541 = vpack.c.bf16 %v1465, %v1462
    %v1542 = vpack.c.bf16 %v1473, %v1470
    %v1543 = vpack.c.bf16 %v1481, %v1478
    %v1544 = vpack.c.bf16 %v1489, %v1486
    %v1545 = vpack.c.bf16 %v1497, %v1494
    %v1546 = vpack.c.bf16 %v1505, %v1502
    %v1547 = vpack.c.bf16 %v1513, %v1510
    %v1580 = vunpack.c.l.b16 %v1516
    %v1581 = vunpack.c.h.b16 %v1516
    %v1582 = vunpack.c.l.b16 %v1517
    %v1583 = vunpack.c.h.b16 %v1517
    %v1584 = vunpack.c.l.b16 %v1518
    %v1585 = vunpack.c.h.b16 %v1518
    %v1586 = vunpack.c.l.b16 %v1519
    %v1587 = vunpack.c.h.b16 %v1519
    %v1588 = vunpack.c.l.b16 %v1520
    %v1589 = vunpack.c.h.b16 %v1520
    %v1590 = vunpack.c.l.b16 %v1521
    %v1591 = vunpack.c.h.b16 %v1521
    %v1592 = vunpack.c.l.b16 %v1522
    %v1593 = vunpack.c.h.b16 %v1522
    %v1594 = vunpack.c.l.b16 %v1523
    %v1595 = vunpack.c.h.b16 %v1523
    %v1596 = vunpack.c.l.b16 %v1524
    %v1597 = vunpack.c.h.b16 %v1524
    %v1598 = vunpack.c.l.b16 %v1525
    %v1599 = vunpack.c.h.b16 %v1525
    %v1600 = vunpack.c.l.b16 %v1526
    %v1601 = vunpack.c.h.b16 %v1526
    %v1602 = vunpack.c.l.b16 %v1527
    %v1603 = vunpack.c.h.b16 %v1527
    %v1604 = vunpack.c.l.b16 %v1528
    %v1605 = vunpack.c.h.b16 %v1528
    %v1606 = vunpack.c.l.b16 %v1529
    %v1607 = vunpack.c.h.b16 %v1529
    %v1608 = vunpack.c.l.b16 %v1530
    %v1609 = vunpack.c.h.b16 %v1530
    %v1610 = vunpack.c.l.b16 %v1531
    %v1611 = vunpack.c.h.b16 %v1531
    %v1612 = vunpack.c.l.b16 %v1532
    %v1613 = vunpack.c.h.b16 %v1532
    %v1614 = vunpack.c.l.b16 %v1533
    %v1615 = vunpack.c.h.b16 %v1533
    %v1616 = vunpack.c.l.b16 %v1534
    %v1617 = vunpack.c.h.b16 %v1534
    %v1618 = vunpack.c.l.b16 %v1535
    %v1619 = vunpack.c.h.b16 %v1535
    %v1620 = vunpack.c.l.b16 %v1536
    %v1621 = vunpack.c.h.b16 %v1536
    %v1622 = vunpack.c.l.b16 %v1537
    %v1623 = vunpack.c.h.b16 %v1537
    %v1624 = vunpack.c.l.b16 %v1538
    %v1625 = vunpack.c.h.b16 %v1538
    %v1626 = vunpack.c.l.b16 %v1539
    %v1627 = vunpack.c.h.b16 %v1539
    %v1628 = vunpack.c.l.b16 %v1540
    %v1629 = vunpack.c.h.b16 %v1540
    %v1630 = vunpack.c.l.b16 %v1541
    %v1631 = vunpack.c.h.b16 %v1541
    %v1632 = vunpack.c.l.b16 %v1542
    %v1633 = vunpack.c.h.b16 %v1542
    %v1634 = vunpack.c.l.b16 %v1543
    %v1635 = vunpack.c.h.b16 %v1543
    %v1636 = vunpack.c.l.b16 %v1544
    %v1637 = vunpack.c.h.b16 %v1544
    %v1638 = vunpack.c.l.b16 %v1545
    %v1639 = vunpack.c.h.b16 %v1545
    %v1640 = vunpack.c.l.b16 %v1546
    %v1641 = vunpack.c.h.b16 %v1546
    %v1642 = vunpack.c.l.b16 %v1547
    %v1643 = vunpack.c.h.b16 %v1547
    %v1644 = vpack.c.b16 %v1580, %v1580
    %v1645 = vpack.c.b16 %v1581, %v1581
    %v1646 = vpack.c.b16 %v1582, %v1582
    %v1647 = vpack.c.b16 %v1583, %v1583
    %v1648 = vpack.c.b16 %v1584, %v1584
    %v1649 = vpack.c.b16 %v1585, %v1585
    %v1650 = vpack.c.b16 %v1586, %v1586
    %v1651 = vpack.c.b16 %v1587, %v1587
    %v1652 = vpack.c.b16 %v1588, %v1588
    %v1653 = vpack.c.b16 %v1589, %v1589
    %v1654 = vpack.c.b16 %v1590, %v1590
    %v1655 = vpack.c.b16 %v1591, %v1591
    %v1656 = vpack.c.b16 %v1592, %v1592
    %v1657 = vpack.c.b16 %v1593, %v1593
    %v1658 = vpack.c.b16 %v1594, %v1594
    %v1659 = vpack.c.b16 %v1595, %v1595
    %v1660 = vpack.c.b16 %v1596, %v1596
    %v1661 = vpack.c.b16 %v1597, %v1597
    %v1662 = vpack.c.b16 %v1598, %v1598
    %v1663 = vpack.c.b16 %v1599, %v1599
    %v1664 = vpack.c.b16 %v1600, %v1600
    %v1665 = vpack.c.b16 %v1601, %v1601
    %v1666 = vpack.c.b16 %v1602, %v1602
    %v1667 = vpack.c.b16 %v1603, %v1603
    %v1668 = vpack.c.b16 %v1604, %v1604
    %v1669 = vpack.c.b16 %v1605, %v1605
    %v1670 = vpack.c.b16 %v1606, %v1606
    %v1671 = vpack.c.b16 %v1607, %v1607
    %v1672 = vpack.c.b16 %v1608, %v1608
    %v1673 = vpack.c.b16 %v1609, %v1609
    %v1674 = vpack.c.b16 %v1610, %v1610
    %v1675 = vpack.c.b16 %v1611, %v1611
    %v1676 = vpack.c.b16 %v1612, %v1612
    %v1677 = vpack.c.b16 %v1613, %v1613
    %v1678 = vpack.c.b16 %v1614, %v1614
    %v1679 = vpack.c.b16 %v1615, %v1615
    %v1680 = vpack.c.b16 %v1616, %v1616
    %v1681 = vpack.c.b16 %v1617, %v1617
    %v1682 = vpack.c.b16 %v1618, %v1618
    %v1683 = vpack.c.b16 %v1619, %v1619
    %v1684 = vpack.c.b16 %v1620, %v1620
    %v1685 = vpack.c.b16 %v1621, %v1621
    %v1686 = vpack.c.b16 %v1622, %v1622
    %v1687 = vpack.c.b16 %v1623, %v1623
    %v1688 = vpack.c.b16 %v1624, %v1624
    %v1689 = vpack.c.b16 %v1625, %v1625
    %v1690 = vpack.c.b16 %v1626, %v1626
    %v1691 = vpack.c.b16 %v1627, %v1627
    %v1692 = vpack.c.b16 %v1628, %v1628
    %v1693 = vpack.c.b16 %v1629, %v1629
    %v1694 = vpack.c.b16 %v1630, %v1630
    %v1695 = vpack.c.b16 %v1631, %v1631
    %v1696 = vpack.c.b16 %v1632, %v1632
    %v1697 = vpack.c.b16 %v1633, %v1633
    %v1698 = vpack.c.b16 %v1634, %v1634
    %v1699 = vpack.c.b16 %v1635, %v1635
    %v1700 = vpack.c.b16 %v1636, %v1636
    %v1701 = vpack.c.b16 %v1637, %v1637
    %v1702 = vpack.c.b16 %v1638, %v1638
    %v1703 = vpack.c.b16 %v1639, %v1639
    %v1704 = vpack.c.b16 %v1640, %v1640
    %v1705 = vpack.c.b16 %v1641, %v1641
    %v1706 = vpack.c.b16 %v1642, %v1642
    %v1707 = vpack.c.b16 %v1643, %v1643
    %1772 = vst [vmem:[#allocation2] sm:$0xf] %v1644
    %1773 = vst [vmem:[#allocation2 + $0x4] sm:$0xf] %v1645
    %1774 = vst [vmem:[#allocation2 + $0x8] sm:$0xf] %v1646
    %1775 = vst [vmem:[#allocation2 + $0xc] sm:$0xf] %v1647
    %1776 = vst [vmem:[#allocation2 + $0x10] sm:$0xf] %v1648
    %1777 = vst [vmem:[#allocation2 + $0x14] sm:$0xf] %v1649
    %1778 = vst [vmem:[#allocation2 + $0x18] sm:$0xf] %v1650
    %1779 = vst [vmem:[#allocation2 + $0x1c] sm:$0xf] %v1651
    %1780 = vst [vmem:[#allocation2 + $0x20] sm:$0xf] %v1652
    %1781 = vst [vmem:[#allocation2 + $0x24] sm:$0xf] %v1653
    %1782 = vst [vmem:[#allocation2 + $0x28] sm:$0xf] %v1654
    %1783 = vst [vmem:[#allocation2 + $0x2c] sm:$0xf] %v1655
    %1784 = vst [vmem:[#allocation2 + $0x30] sm:$0xf] %v1656
    %1785 = vst [vmem:[#allocation2 + $0x34] sm:$0xf] %v1657
    %1786 = vst [vmem:[#allocation2 + $0x38] sm:$0xf] %v1658
    %1787 = vst [vmem:[#allocation2 + $0x3c] sm:$0xf] %v1659
    %1788 = vst [vmem:[#allocation2 + $0x40] sm:$0xf] %v1660
    %1789 = vst [vmem:[#allocation2 + $0x44] sm:$0xf] %v1661
    %1790 = vst [vmem:[#allocation2 + $0x48] sm:$0xf] %v1662
    %1791 = vst [vmem:[#allocation2 + $0x4c] sm:$0xf] %v1663
    %1792 = vst [vmem:[#allocation2 + $0x50] sm:$0xf] %v1664
    %1793 = vst [vmem:[#allocation2 + $0x54] sm:$0xf] %v1665
    %1794 = vst [vmem:[#allocation2 + $0x58] sm:$0xf] %v1666
    %1795 = vst [vmem:[#allocation2 + $0x5c] sm:$0xf] %v1667
    %1796 = vst [vmem:[#allocation2 + $0x60] sm:$0xf] %v1668
    %1797 = vst [vmem:[#allocation2 + $0x64] sm:$0xf] %v1669
    %1798 = vst [vmem:[#allocation2 + $0x68] sm:$0xf] %v1670
    %1799 = vst [vmem:[#allocation2 + $0x6c] sm:$0xf] %v1671
    %1800 = vst [vmem:[#allocation2 + $0x70] sm:$0xf] %v1672
    %1801 = vst [vmem:[#allocation2 + $0x74] sm:$0xf] %v1673
    %1802 = vst [vmem:[#allocation2 + $0x78] sm:$0xf] %v1674
    %1803 = vst [vmem:[#allocation2 + $0x7c] sm:$0xf] %v1675
    %1804 = vst [vmem:[#allocation2 + $0x80] sm:$0xf] %v1676
    %1805 = vst [vmem:[#allocation2 + $0x84] sm:$0xf] %v1677
    %1806 = vst [vmem:[#allocation2 + $0x88] sm:$0xf] %v1678
    %1807 = vst [vmem:[#allocation2 + $0x8c] sm:$0xf] %v1679
    %1808 = vst [vmem:[#allocation2 + $0x90] sm:$0xf] %v1680
    %1809 = vst [vmem:[#allocation2 + $0x94] sm:$0xf] %v1681
    %1810 = vst [vmem:[#allocation2 + $0x98] sm:$0xf] %v1682
    %1811 = vst [vmem:[#allocation2 + $0x9c] sm:$0xf] %v1683
    %1812 = vst [vmem:[#allocation2 + $0xa0] sm:$0xf] %v1684
    %1813 = vst [vmem:[#allocation2 + $0xa4] sm:$0xf] %v1685
    %1814 = vst [vmem:[#allocation2 + $0xa8] sm:$0xf] %v1686
    %1815 = vst [vmem:[#allocation2 + $0xac] sm:$0xf] %v1687
    %1816 = vst [vmem:[#allocation2 + $0xb0] sm:$0xf] %v1688
    %1817 = vst [vmem:[#allocation2 + $0xb4] sm:$0xf] %v1689
    %1818 = vst [vmem:[#allocation2 + $0xb8] sm:$0xf] %v1690
    %1819 = vst [vmem:[#allocation2 + $0xbc] sm:$0xf] %v1691
    %1820 = vst [vmem:[#allocation2 + $0xc0] sm:$0xf] %v1692
    %1821 = vst [vmem:[#allocation2 + $0xc4] sm:$0xf] %v1693
    %1822 = vst [vmem:[#allocation2 + $0xc8] sm:$0xf] %v1694
    %1823 = vst [vmem:[#allocation2 + $0xcc] sm:$0xf] %v1695
    %1824 = vst [vmem:[#allocation2 + $0xd0] sm:$0xf] %v1696
    %1825 = vst [vmem:[#allocation2 + $0xd4] sm:$0xf] %v1697
    %1826 = vst [vmem:[#allocation2 + $0xd8] sm:$0xf] %v1698
    %1827 = vst [vmem:[#allocation2 + $0xdc] sm:$0xf] %v1699
    %1828 = vst [vmem:[#allocation2 + $0xe0] sm:$0xf] %v1700
    %1829 = vst [vmem:[#allocation2 + $0xe4] sm:$0xf] %v1701
    %1830 = vst [vmem:[#allocation2 + $0xe8] sm:$0xf] %v1702
    %1831 = vst [vmem:[#allocation2 + $0xec] sm:$0xf] %v1703
    %1832 = vst [vmem:[#allocation2 + $0xf0] sm:$0xf] %v1704
    %1833 = vst [vmem:[#allocation2 + $0xf4] sm:$0xf] %v1705
    %1834 = vst [vmem:[#allocation2 + $0xf8] sm:$0xf] %v1706
    %1835 = vst [vmem:[#allocation2 + $0xfc] sm:$0xf] %v1707
    // Predicated region
    $region22: #{encode.1} parent=1 // pred_check
      _
    $region23: #{encode.1} parent=1 // pred_check_branch
      %1837 = sbr.rel (0) target = $region25
    $region24: #{encode.1} parent=1 // pred_region
      %s1839 = ssub.s32 4096, 4096
      %1840 = vsyncadd [#allocation3], %s1839
      %s1841 = sshll.u32 [#allocation2], 4
      %s1842 = int_to_ptr.vmem [resolvable:$true] %s1841
      %1847 = dma.vmem_to_hbm [thread:$0]  %s1842, 4096, %s5, [#allocation3], 64, 64, 4
    $region25: #{encode.1} parent=1 // pred_fallthru
      _
    // Predicated region
    $region26: #{encode.1} parent=1 // pred_check
      _
    $region27: #{encode.1} parent=1 // pred_check_branch
      %1849 = sbr.rel (0) target = $region29
    $region28: #{encode.1} parent=1 // pred_region
      %1850 = dma.done [#allocation3], 4096
    $region29: #{encode.1} parent=1 // pred_fallthru
      _
    %1851 = vsyncpa [#allocation3], 1

</llo_original>
